<compile_context>
chip_gen: v7x
topology: tpu7x:2x2x1
jax: 0.10.0
libtpu: 0.0.40
codegen_flags: <defaults>
</compile_context>

<pallas_src>
import math

import jax
import jax.numpy as jnp
from jax.experimental import pallas as pl
from jax.experimental.pallas import tpu as pltpu

IN_DIM = 784
H1 = 512
H2 = 256
OUT_DIM = 1
OUT_PAD = 128  # lane-dense padded width of the final layer


def _round_up(x, m):
    return ((x + m - 1) // m) * m


def _disc_kernel(x_ref, w1_ref, b1_ref, w2_ref, b2_ref, w3_ref, b3_ref, o_ref):
    # Fused 3-layer MLP forward for one batch tile (bm rows).
    x = x_ref[...]                                                     # (bm, 784)

    h1 = jnp.dot(x, w1_ref[...], preferred_element_type=jnp.float32)   # (bm, 512)
    h1 = h1 + b1_ref[...]
    h1 = jnp.where(h1 > 0, h1, 0.2 * h1)                               # LeakyReLU(0.2)

    h2 = jnp.dot(h1, w2_ref[...], preferred_element_type=jnp.float32)  # (bm, 256)
    h2 = h2 + b2_ref[...]
    h2 = jnp.where(h2 > 0, h2, 0.2 * h2)                               # LeakyReLU(0.2)

    h3 = jnp.dot(h2, w3_ref[...], preferred_element_type=jnp.float32)  # (bm, 128)
    h3 = h3 + b3_ref[...]
    o_ref[...] = jax.nn.sigmoid(h3)                                    # Sigmoid (lane-dense store)


def discriminator_forward(img, params, *, bm=256):
    """img: (B, 1, 28, 28) or (B, 784) float32 -> (B, 1) float32."""
    w1, b1, w2, b2, w3, b3 = params
    x = img.reshape(img.shape[0], -1).astype(jnp.float32)              # (B, 784)
    B = x.shape[0]

    # Lane-dense final layer: zero-pad (H2, 1)/(1, 1) -> (H2, 128)/(1, 128).
    # Padded output columns are sigmoid(0 + 0) = 0.5 junk; sliced away below.
    w3p = jnp.pad(w3.astype(jnp.float32), ((0, 0), (0, OUT_PAD - w3.shape[1])))
    b3p = jnp.pad(b3.astype(jnp.float32), ((0, 0), (0, OUT_PAD - b3.shape[1])))

    # Batch tile: multiple of 8 sublanes, no larger than the (padded) batch.
    bm_eff = max(8, min(_round_up(bm, 8), _round_up(B, 8)))
    B_pad = _round_up(B, bm_eff)
    if B_pad != B:
        x = jnp.pad(x, ((0, B_pad - B), (0, 0)))                       # zero-pad rows

    grid = (B_pad // bm_eff,)

    flops = 2 * B_pad * (IN_DIM * H1 + H1 * H2 + H2 * OUT_PAD)
    bytes_accessed = 4 * (
        B_pad * IN_DIM                     # x
        + IN_DIM * H1 + H1                 # layer 1
        + H1 * H2 + H2                     # layer 2
        + H2 * OUT_PAD + OUT_PAD           # layer 3 (padded)
        + B_pad * OUT_PAD                  # output
    )
    cost = pl.CostEstimate(
        flops=flops,
        transcendentals=B_pad * OUT_PAD,   # sigmoid exp
        bytes_accessed=bytes_accessed,
    )

    out = pl.pallas_call(
        _disc_kernel,
        out_shape=jax.ShapeDtypeStruct((B_pad, OUT_PAD), jnp.float32),
        grid_spec=pltpu.PrefetchScalarGridSpec(
            num_scalar_prefetch=0,
            grid=grid,
            in_specs=[
                pl.BlockSpec((bm_eff, IN_DIM), lambda i: (i, 0)),   # x tile
                pl.BlockSpec((IN_DIM, H1), lambda i: (0, 0)),       # W1 (replicated)
                pl.BlockSpec((1, H1), lambda i: (0, 0)),            # b1
                pl.BlockSpec((H1, H2), lambda i: (0, 0)),           # W2
                pl.BlockSpec((1, H2), lambda i: (0, 0)),            # b2
                pl.BlockSpec((H2, OUT_PAD), lambda i: (0, 0)),      # W3 (lane-padded)
                pl.BlockSpec((1, OUT_PAD), lambda i: (0, 0)),       # b3 (lane-padded)
            ],
            out_specs=pl.BlockSpec((bm_eff, OUT_PAD), lambda i: (i, 0)),
        ),
        compiler_params=pltpu.CompilerParams(
            dimension_semantics=("parallel",),
            vmem_limit_bytes=64 * 1024 * 1024,  # headroom for large bm on v5e's 16 MiB scoped default
        ),
        cost_estimate=cost,
    )(x, w1, b1, w2, b2, w3p, b3p)

    return out[:B, :OUT_DIM]


def init_params(key):
    """Deterministic init matching PyTorch nn.Linear default:
    U(-1/sqrt(fan_in), 1/sqrt(fan_in)) for both weight and bias."""
    def linear(key, fan_in, fan_out):
        kw, kb = jax.random.split(key)
        bound = 1.0 / math.sqrt(fan_in)
        w = jax.random.uniform(kw, (fan_in, fan_out), jnp.float32, -bound, bound)
        b = jax.random.uniform(kb, (1, fan_out), jnp.float32, -bound, bound)
        return w, b

    k1, k2, k3 = jax.random.split(key, 3)
    w1, b1 = linear(k1, IN_DIM, H1)
    w2, b2 = linear(k2, H1, H2)
    w3, b3 = linear(k3, H2, OUT_DIM)
    return (w1, b1, w2, b2, w3, b3)


def _reference_forward(img, params):
    """Plain-JAX reference of the same forward pass."""
    w1, b1, w2, b2, w3, b3 = params
    x = img.reshape(img.shape[0], -1).astype(jnp.float32)
    h = x @ w1 + b1
    h = jnp.where(h > 0, h, 0.2 * h)
    h = h @ w2 + b2
    h = jnp.where(h > 0, h, 0.2 * h)
    h = h @ w3 + b3
    return jax.nn.sigmoid(h)


if __name__ == "__main__":
    key = jax.random.PRNGKey(0)
    kp, kx = jax.random.split(key)

    params = init_params(kp)

    # Small MNIST-like batch: (B, 1, 28, 28) -> flattened to 784 inside the wrapper.
    B = 16
    img = jax.random.normal(kx, (B, 1, 28, 28), dtype=jnp.float32)

    out = discriminator_forward(img, params)          # bm clamps to the batch size
    out = jax.block_until_ready(out)
    ref = _reference_forward(img, params)
    assert out.shape == (B, 1), out.shape
    assert jnp.allclose(out, ref, atol=1e-5, rtol=1e-5), "mismatch vs reference"

    # Exercise the padding path (batch not a multiple of the 8-row sublane tile).
    B2 = 10
    img2 = jax.random.normal(jax.random.PRNGKey(1), (B2, 1, 28, 28), dtype=jnp.float32)
    out2 = jax.block_until_ready(discriminator_forward(img2, params))
    ref2 = _reference_forward(img2, params)
    assert out2.shape == (B2, 1), out2.shape
    assert jnp.allclose(out2, ref2, atol=1e-5, rtol=1e-5), "mismatch vs reference (padded batch)"

    print("KERNEL_OK")
</pallas_src>

<mosaic_0001>
module attributes {stable_mosaic.version = 11 : i64} {
  func.func @_disc_kernel(%arg0: i32, %arg1: memref<16x784xf32, #tpu.memory_space<vmem>>, %arg2: memref<784x512xf32, #tpu.memory_space<vmem>>, %arg3: memref<1x512xf32, #tpu.memory_space<vmem>>, %arg4: memref<512x256xf32, #tpu.memory_space<vmem>>, %arg5: memref<1x256xf32, #tpu.memory_space<vmem>>, %arg6: memref<256x128xf32, #tpu.memory_space<vmem>>, %arg7: memref<1x128xf32, #tpu.memory_space<vmem>>, %arg8: memref<16x128xf32, #tpu.memory_space<vmem>>) attributes {dimension_semantics = [#tpu.dimension_semantics<parallel>], iteration_bounds = array<i64: 1>, scalar_prefetch = 0 : i64, scratch_operands = 0 : i64, tpu.core_type = #tpu.core_type<tc>, window_params = [{transform_indices = @transform_0, window_bounds = array<i64: 16, 784>}, {pipeline_mode = #tpu.pipeline_mode<synchronous>, transform_indices = @transform_1, window_bounds = array<i64: 784, 512>}, {pipeline_mode = #tpu.pipeline_mode<synchronous>, transform_indices = @transform_2, window_bounds = array<i64: 1, 512>}, {pipeline_mode = #tpu.pipeline_mode<synchronous>, transform_indices = @transform_3, window_bounds = array<i64: 512, 256>}, {pipeline_mode = #tpu.pipeline_mode<synchronous>, transform_indices = @transform_4, window_bounds = array<i64: 1, 256>}, {pipeline_mode = #tpu.pipeline_mode<synchronous>, transform_indices = @transform_5, window_bounds = array<i64: 256, 128>}, {pipeline_mode = #tpu.pipeline_mode<synchronous>, transform_indices = @transform_6, window_bounds = array<i64: 1, 128>}, {transform_indices = @transform_7, window_bounds = array<i64: 16, 128>}]} {
    %c0 = arith.constant 0 : index
    %c0_0 = arith.constant 0 : index
    %0 = vector.load %arg1[%c0, %c0_0] : memref<16x784xf32, #tpu.memory_space<vmem>>, vector<16x784xf32>
    %c0_1 = arith.constant 0 : index
    %c0_2 = arith.constant 0 : index
    %1 = vector.load %arg2[%c0_1, %c0_2] : memref<784x512xf32, #tpu.memory_space<vmem>>, vector<784x512xf32>
    %cst = arith.constant dense<0.000000e+00> : vector<16x512xf32>
    %2 = tpu.matmul %0, %1, %cst {dimension_numbers = #tpu.dot_dimension_numbers<[1], [0], [0], [1], [0, 0, 1, 1], [], []>} : vector<16x784xf32>, vector<784x512xf32>, vector<16x512xf32> -> vector<16x512xf32>
    %c0_3 = arith.constant 0 : index
    %c0_4 = arith.constant 0 : index
    %3 = vector.load %arg3[%c0_3, %c0_4] : memref<1x512xf32, #tpu.memory_space<vmem>>, vector<1x512xf32>
    %4 = vector.broadcast %3 : vector<1x512xf32> to vector<16x512xf32>
    %5 = arith.addf %2, %4 : vector<16x512xf32>
    %cst_5 = arith.constant 0.000000e+00 : f32
    %6 = vector.broadcast %cst_5 : f32 to vector<16x512xf32>
    %7 = arith.cmpf ogt, %5, %6 : vector<16x512xf32>
    %cst_6 = arith.constant 2.000000e-01 : f32
    %8 = vector.broadcast %cst_6 : f32 to vector<16x512xf32>
    %9 = arith.mulf %8, %5 : vector<16x512xf32>
    %10 = arith.select %7, %5, %9 : vector<16x512xi1>, vector<16x512xf32>
    %c0_7 = arith.constant 0 : index
    %c0_8 = arith.constant 0 : index
    %11 = vector.load %arg4[%c0_7, %c0_8] : memref<512x256xf32, #tpu.memory_space<vmem>>, vector<512x256xf32>
    %cst_9 = arith.constant dense<0.000000e+00> : vector<16x256xf32>
    %12 = tpu.matmul %10, %11, %cst_9 {dimension_numbers = #tpu.dot_dimension_numbers<[1], [0], [0], [1], [0, 0, 1, 1], [], []>} : vector<16x512xf32>, vector<512x256xf32>, vector<16x256xf32> -> vector<16x256xf32>
    %c0_10 = arith.constant 0 : index
    %c0_11 = arith.constant 0 : index
    %13 = vector.load %arg5[%c0_10, %c0_11] : memref<1x256xf32, #tpu.memory_space<vmem>>, vector<1x256xf32>
    %14 = vector.broadcast %13 : vector<1x256xf32> to vector<16x256xf32>
    %15 = arith.addf %12, %14 : vector<16x256xf32>
    %cst_12 = arith.constant 0.000000e+00 : f32
    %16 = vector.broadcast %cst_12 : f32 to vector<16x256xf32>
    %17 = arith.cmpf ogt, %15, %16 : vector<16x256xf32>
    %cst_13 = arith.constant 2.000000e-01 : f32
    %18 = vector.broadcast %cst_13 : f32 to vector<16x256xf32>
    %19 = arith.mulf %18, %15 : vector<16x256xf32>
    %20 = arith.select %17, %15, %19 : vector<16x256xi1>, vector<16x256xf32>
    %c0_14 = arith.constant 0 : index
    %c0_15 = arith.constant 0 : index
    %21 = vector.load %arg6[%c0_14, %c0_15] : memref<256x128xf32, #tpu.memory_space<vmem>>, vector<256x128xf32>
    %cst_16 = arith.constant dense<0.000000e+00> : vector<16x128xf32>
    %22 = tpu.matmul %20, %21, %cst_16 {dimension_numbers = #tpu.dot_dimension_numbers<[1], [0], [0], [1], [0, 0, 1, 1], [], []>} : vector<16x256xf32>, vector<256x128xf32>, vector<16x128xf32> -> vector<16x128xf32>
    %c0_17 = arith.constant 0 : index
    %c0_18 = arith.constant 0 : index
    %23 = vector.load %arg7[%c0_17, %c0_18] : memref<1x128xf32, #tpu.memory_space<vmem>>, vector<1x128xf32>
    %24 = vector.broadcast %23 : vector<1x128xf32> to vector<16x128xf32>
    %25 = arith.addf %22, %24 : vector<16x128xf32>
    %26 = arith.negf %25 : vector<16x128xf32>
    %27 = math.exp %26 : vector<16x128xf32>
    %cst_19 = arith.constant 1.000000e+00 : f32
    %28 = vector.broadcast %cst_19 : f32 to vector<16x128xf32>
    %29 = arith.addf %28, %27 : vector<16x128xf32>
    %30 = arith.divf %28, %29 : vector<16x128xf32>
    %c0_20 = arith.constant 0 : index
    %c0_21 = arith.constant 0 : index
    %31 = vector.load %arg8[%c0_20, %c0_21] : memref<16x128xf32, #tpu.memory_space<vmem>>, vector<16x128xf32>
    tpu.vector_store %arg8[%c0_20, %c0_21], %30 {strides = array<i32>} : memref<16x128xf32, #tpu.memory_space<vmem>>, vector<16x128xf32>,
    return
  }
  func.func @transform_0(%arg0: i32) -> (i32, i32) {
    %c0_i32 = arith.constant 0 : i32
    %c0_i32_0 = arith.constant 0 : i32
    return %arg0, %c0_i32 : i32, i32
  }
  func.func @transform_1(%arg0: i32) -> (i32, i32) {
    %c0_i32 = arith.constant 0 : i32
    %c0_i32_0 = arith.constant 0 : i32
    %c0_i32_1 = arith.constant 0 : i32
    return %c0_i32, %c0_i32_0 : i32, i32
  }
  func.func @transform_2(%arg0: i32) -> (i32, i32) {
    %c0_i32 = arith.constant 0 : i32
    %c0_i32_0 = arith.constant 0 : i32
    %c0_i32_1 = arith.constant 0 : i32
    return %c0_i32, %c0_i32_0 : i32, i32
  }
  func.func @transform_3(%arg0: i32) -> (i32, i32) {
    %c0_i32 = arith.constant 0 : i32
    %c0_i32_0 = arith.constant 0 : i32
    %c0_i32_1 = arith.constant 0 : i32
    return %c0_i32, %c0_i32_0 : i32, i32
  }
  func.func @transform_4(%arg0: i32) -> (i32, i32) {
    %c0_i32 = arith.constant 0 : i32
    %c0_i32_0 = arith.constant 0 : i32
    %c0_i32_1 = arith.constant 0 : i32
    return %c0_i32, %c0_i32_0 : i32, i32
  }
  func.func @transform_5(%arg0: i32) -> (i32, i32) {
    %c0_i32 = arith.constant 0 : i32
    %c0_i32_0 = arith.constant 0 : i32
    %c0_i32_1 = arith.constant 0 : i32
    return %c0_i32, %c0_i32_0 : i32, i32
  }
  func.func @transform_6(%arg0: i32) -> (i32, i32) {
    %c0_i32 = arith.constant 0 : i32
    %c0_i32_0 = arith.constant 0 : i32
    %c0_i32_1 = arith.constant 0 : i32
    return %c0_i32, %c0_i32_0 : i32, i32
  }
  func.func @transform_7(%arg0: i32) -> (i32, i32) {
    %c0_i32 = arith.constant 0 : i32
    %c0_i32_0 = arith.constant 0 : i32
    return %arg0, %c0_i32 : i32, i32
  }
}

</mosaic_0001>

<llo_original>
// kernel: tpu_custom_call.1
$region0: #{tpu_custom_call.1}
  #allocation0 [shape = 'u32[]', space=smem, size = 0x4, offset = 0x4, fixed_abs, tag = 'smem constant byte address 0x4 - core index']
  #allocation1 [shape = 'u32[144,128]{1,0:T(1,128)}', space=vmem, size = 0x12000, scoped, tag = 'internal scratch']
  %s0 = inlined_call_operand.hbm [shape: f32[16,784], index: 0, kind: input, shape index: {}]
  %s1 = inlined_call_operand.hbm [shape: f32[784,512], index: 1, kind: input, shape index: {}]
  %s2 = inlined_call_operand.hbm [shape: f32[1,512], index: 2, kind: input, shape index: {}]
  %s3 = inlined_call_operand.hbm [shape: f32[512,256], index: 3, kind: input, shape index: {}]
  %s4 = inlined_call_operand.hbm [shape: f32[1,256], index: 4, kind: input, shape index: {}]
  %s5 = inlined_call_operand.hbm [shape: f32[256,128], index: 5, kind: input, shape index: {}]
  %s6 = inlined_call_operand.hbm [shape: f32[1,128], index: 6, kind: input, shape index: {}]
  %s7 = inlined_call_operand.hbm [shape: f32[16,128], index: 7, kind: output, shape index: {}]
  %s8 = sld [smem:[#allocation0]]
  $region66: #{tpu_custom_call.1} parent=0
    _
  %s10 = ssub.s32 1, %s8
  %s11 = scalar_select 0, %s10, %s8
  $region1: #{tpu_custom_call.1} parent=0
    #allocation2 [shape = 'u8[57344]{0}', space=vmem, size = 0xe000, scoped, tag = 'input window, operand 0, single buffered']
    #allocation3 [shape = 's32[1]{0}', space=sflag, size = 0x4, scoped, tag = 'scoped memory for tpu_custom_call.1']
    #allocation4 [shape = 's32[1]{0}', space=sflag, size = 0x4, scoped, tag = 'scoped memory for tpu_custom_call.1']
    #allocation5 [shape = 'u8[1605632]{0}', space=vmem, size = 0x188000, scoped, tag = 'input window, operand 1, single buffered']
    #allocation6 [shape = 's32[1]{0}', space=sflag, size = 0x4, scoped, tag = 'scoped memory for tpu_custom_call.1']
    #allocation7 [shape = 'u8[2048]{0}', space=vmem, size = 0x800, scoped, tag = 'input window, operand 2, single buffered']
    #allocation8 [shape = 'u8[524288]{0}', space=vmem, size = 0x80000, scoped, tag = 'input window, operand 3, single buffered']
    #allocation9 [shape = 's32[1]{0}', space=sflag, size = 0x4, scoped, tag = 'scoped memory for tpu_custom_call.1']
    #allocation10 [shape = 'u8[1024]{0}', space=vmem, size = 0x400, scoped, tag = 'input window, operand 4, single buffered']
    #allocation11 [shape = 'u8[131072]{0}', space=vmem, size = 0x20000, scoped, tag = 'input window, operand 5, single buffered']
    #allocation12 [shape = 's32[1]{0}', space=sflag, size = 0x4, scoped, tag = 'scoped memory for tpu_custom_call.1']
    #allocation13 [shape = 'u8[512]{0}', space=vmem, size = 0x400, scoped, tag = 'input window, operand 6, single buffered']
    #allocation14 [shape = 'u8[8192]{0}', space=vmem, size = 0x2000, scoped, tag = 'output window, operand 0, single buffered']
    %12 = vsyncpa [#allocation3], 0
    %13 = vsyncpa [#allocation6], 0
    %14 = vsyncpa [#allocation9], 0
    %15 = vsyncpa [#allocation12], 0
    %16 = vsyncpa [#allocation4], 0
    // Predicated region
    $region2: #{tpu_custom_call.1} parent=1 // pred_check
      _
    $region3: #{tpu_custom_call.1} parent=1 // pred_check_branch
      %18 = sbr.rel (0) target = $region5
    $region4: #{tpu_custom_call.1} parent=1 // pred_region
      %s20 = ssub.s32 1792, 1792
      %21 = vsyncadd [#allocation3], %s20
      %s22 = sshll.u32 [#allocation2], 4
      %s23 = int_to_ptr.vmem [resolvable:$true] %s22
      %28 = dma.hbm_to_vmem [thread:$0]  %s0, 1792, %s23, [#allocation3], 896, 896, 56
    $region5: #{tpu_custom_call.1} parent=1 // pred_fallthru
      _
    // Predicated region
    $region6: #{tpu_custom_call.1} parent=1 // pred_check
      _
    $region7: #{tpu_custom_call.1} parent=1 // pred_check_branch
      %30 = sbr.rel (0) target = $region9
    $region8: #{tpu_custom_call.1} parent=1 // pred_region
      %s32 = ssub.s32 50176, 50176
      %33 = vsyncadd [#allocation6], %s32
      %s34 = sshll.u32 [#allocation5], 4
      %s35 = int_to_ptr.vmem [resolvable:$true] %s34
      %40 = dma.hbm_to_vmem [thread:$0]  %s1, 50176, %s35, [#allocation6], 512, 512, 32
    $region9: #{tpu_custom_call.1} parent=1 // pred_fallthru
      _
    // Predicated region
    $region10: #{tpu_custom_call.1} parent=1 // pred_check
      _
    $region11: #{tpu_custom_call.1} parent=1 // pred_check_branch
      %42 = sbr.rel (0) target = $region13
    $region12: #{tpu_custom_call.1} parent=1 // pred_region
      %s44 = ssub.s32 64, 64
      %45 = vsyncadd [#allocation6], %s44
      %s47 = sshll.u32 [#allocation7], 4
      %s48 = int_to_ptr.vmem [resolvable:$true] %s47
      %50 = dma.hbm_to_vmem [thread:$0]  %s2, 64, %s48, [#allocation6]
    $region13: #{tpu_custom_call.1} parent=1 // pred_fallthru
      _
    // Predicated region
    $region14: #{tpu_custom_call.1} parent=1 // pred_check
      _
    $region15: #{tpu_custom_call.1} parent=1 // pred_check_branch
      %52 = sbr.rel (0) target = $region17
    $region16: #{tpu_custom_call.1} parent=1 // pred_region
      %s54 = ssub.s32 16384, 16384
      %55 = vsyncadd [#allocation9], %s54
      %s56 = sshll.u32 [#allocation8], 4
      %s57 = int_to_ptr.vmem [resolvable:$true] %s56
      %62 = dma.hbm_to_vmem [thread:$0]  %s3, 16384, %s57, [#allocation9], 256, 256, 16
    $region17: #{tpu_custom_call.1} parent=1 // pred_fallthru
      _
    // Predicated region
    $region18: #{tpu_custom_call.1} parent=1 // pred_check
      _
    $region19: #{tpu_custom_call.1} parent=1 // pred_check_branch
      %64 = sbr.rel (0) target = $region21
    $region20: #{tpu_custom_call.1} parent=1 // pred_region
      %s66 = ssub.s32 32, 32
      %67 = vsyncadd [#allocation9], %s66
      %s69 = sshll.u32 [#allocation10], 4
      %s70 = int_to_ptr.vmem [resolvable:$true] %s69
      %72 = dma.hbm_to_vmem [thread:$0]  %s4, 32, %s70, [#allocation9]
    $region21: #{tpu_custom_call.1} parent=1 // pred_fallthru
      _
    // Predicated region
    $region22: #{tpu_custom_call.1} parent=1 // pred_check
      _
    $region23: #{tpu_custom_call.1} parent=1 // pred_check_branch
      %74 = sbr.rel (0) target = $region25
    $region24: #{tpu_custom_call.1} parent=1 // pred_region
      %s76 = ssub.s32 4096, 4096
      %77 = vsyncadd [#allocation12], %s76
      %s78 = sshll.u32 [#allocation11], 4
      %s79 = int_to_ptr.vmem [resolvable:$true] %s78
      %84 = dma.hbm_to_vmem [thread:$0]  %s5, 4096, %s79, [#allocation12], 128, 128, 8
    $region25: #{tpu_custom_call.1} parent=1 // pred_fallthru
      _
    // Predicated region
    $region26: #{tpu_custom_call.1} parent=1 // pred_check
      _
    $region27: #{tpu_custom_call.1} parent=1 // pred_check_branch
      %86 = sbr.rel (0) target = $region29
    $region28: #{tpu_custom_call.1} parent=1 // pred_region
      %s88 = ssub.s32 16, 16
      %89 = vsyncadd [#allocation12], %s88
      %s91 = sshll.u32 [#allocation13], 4
      %s92 = int_to_ptr.vmem [resolvable:$true] %s91
      %94 = dma.hbm_to_vmem [thread:$0]  %s6, 16, %s92, [#allocation12]
    $region29: #{tpu_custom_call.1} parent=1 // pred_fallthru
      _
    // Predicated region
    $region30: #{tpu_custom_call.1} parent=1 // pred_check
      _
    $region31: #{tpu_custom_call.1} parent=1 // pred_check_branch
      %96 = sbr.rel (0) target = $region33
    $region32: #{tpu_custom_call.1} parent=1 // pred_region
      %97 = dma.done [#allocation3], 1792
    $region33: #{tpu_custom_call.1} parent=1 // pred_fallthru
      _
    // Predicated region
    $region34: #{tpu_custom_call.1} parent=1 // pred_check
      _
    $region35: #{tpu_custom_call.1} parent=1 // pred_check_branch
      %99 = sbr.rel (0) target = $region37
    $region36: #{tpu_custom_call.1} parent=1 // pred_region
      %100 = dma.done [#allocation6], 50176
    $region37: #{tpu_custom_call.1} parent=1 // pred_fallthru
      _
    // Predicated region
    $region38: #{tpu_custom_call.1} parent=1 // pred_check
      _
    $region39: #{tpu_custom_call.1} parent=1 // pred_check_branch
      %102 = sbr.rel (0) target = $region41
    $region40: #{tpu_custom_call.1} parent=1 // pred_region
      %103 = dma.done [#allocation6], 64
    $region41: #{tpu_custom_call.1} parent=1 // pred_fallthru
      _
    // Predicated region
    $region42: #{tpu_custom_call.1} parent=1 // pred_check
      _
    $region43: #{tpu_custom_call.1} parent=1 // pred_check_branch
      %105 = sbr.rel (0) target = $region45
    $region44: #{tpu_custom_call.1} parent=1 // pred_region
      %106 = dma.done [#allocation9], 16384
    $region45: #{tpu_custom_call.1} parent=1 // pred_fallthru
      _
    // Predicated region
    $region46: #{tpu_custom_call.1} parent=1 // pred_check
      _
    $region47: #{tpu_custom_call.1} parent=1 // pred_check_branch
      %108 = sbr.rel (0) target = $region49
    $region48: #{tpu_custom_call.1} parent=1 // pred_region
      %109 = dma.done [#allocation9], 32
    $region49: #{tpu_custom_call.1} parent=1 // pred_fallthru
      _
    // Predicated region
    $region50: #{tpu_custom_call.1} parent=1 // pred_check
      _
    $region51: #{tpu_custom_call.1} parent=1 // pred_check_branch
      %111 = sbr.rel (0) target = $region53
    $region52: #{tpu_custom_call.1} parent=1 // pred_region
      %112 = dma.done [#allocation12], 4096
    $region53: #{tpu_custom_call.1} parent=1 // pred_fallthru
      _
    // Predicated region
    $region54: #{tpu_custom_call.1} parent=1 // pred_check
      _
    $region55: #{tpu_custom_call.1} parent=1 // pred_check_branch
      %114 = sbr.rel (0) target = $region57
    $region56: #{tpu_custom_call.1} parent=1 // pred_region
      %115 = dma.done [#allocation12], 16
    $region57: #{tpu_custom_call.1} parent=1 // pred_fallthru
      _
    %v116 = vld [vmem:[#allocation2] sm:$0xff]
    %v117 = vld [vmem:[#allocation2 + $0x8] sm:$0xff]
    %v118 = vld [vmem:[#allocation2 + $0x10] sm:$0xff]
    %v119 = vld [vmem:[#allocation2 + $0x18] sm:$0xff]
    %v120 = vld [vmem:[#allocation2 + $0x20] sm:$0xff]
    %v121 = vld [vmem:[#allocation2 + $0x28] sm:$0xff]
    %v122 = vld [vmem:[#allocation2 + $0x30] sm:$0xff]
    %v123 = vld [vmem:[#allocation2 + $0x38] sm:$0xff]
    %v124 = vld [vmem:[#allocation2 + $0x40] sm:$0xff]
    %v125 = vld [vmem:[#allocation2 + $0x48] sm:$0xff]
    %v126 = vld [vmem:[#allocation2 + $0x50] sm:$0xff]
    %v127 = vld [vmem:[#allocation2 + $0x58] sm:$0xff]
    %v128 = vld [vmem:[#allocation2 + $0x60] sm:$0xff]
    %v129 = vld [vmem:[#allocation2 + $0x68] sm:$0xff]
    %v130 = vld [vmem:[#allocation5] sm:$0xff]
    %v131 = vld [vmem:[#allocation5 + $0x8] sm:$0xff]
    %v132 = vld [vmem:[#allocation5 + $0x10] sm:$0xff]
    %v133 = vld [vmem:[#allocation5 + $0x18] sm:$0xff]
    %v134 = vld [vmem:[#allocation5 + $0x20] sm:$0xff]
    %v135 = vld [vmem:[#allocation5 + $0x28] sm:$0xff]
    %v136 = vld [vmem:[#allocation5 + $0x30] sm:$0xff]
    %v137 = vld [vmem:[#allocation5 + $0x38] sm:$0xff]
    %v138 = vld [vmem:[#allocation5 + $0x40] sm:$0xff]
    %v139 = vld [vmem:[#allocation5 + $0x48] sm:$0xff]
    %v140 = vld [vmem:[#allocation5 + $0x50] sm:$0xff]
    %v141 = vld [vmem:[#allocation5 + $0x58] sm:$0xff]
    %v142 = vld [vmem:[#allocation5 + $0x60] sm:$0xff]
    %v143 = vld [vmem:[#allocation5 + $0x68] sm:$0xff]
    %v144 = vld [vmem:[#allocation5 + $0x70] sm:$0xff]
    %v145 = vld [vmem:[#allocation5 + $0x78] sm:$0xff]
    %v146 = vld [vmem:[#allocation5 + $0x80] sm:$0xff]
    %v147 = vld [vmem:[#allocation5 + $0x88] sm:$0xff]
    %v148 = vld [vmem:[#allocation5 + $0x90] sm:$0xff]
    %v149 = vld [vmem:[#allocation5 + $0x98] sm:$0xff]
    %v150 = vld [vmem:[#allocation5 + $0xa0] sm:$0xff]
    %v151 = vld [vmem:[#allocation5 + $0xa8] sm:$0xff]
    %v152 = vld [vmem:[#allocation5 + $0xb0] sm:$0xff]
    %v153 = vld [vmem:[#allocation5 + $0xb8] sm:$0xff]
    %v154 = vld [vmem:[#allocation5 + $0xc0] sm:$0xff]
    %v155 = vld [vmem:[#allocation5 + $0xc8] sm:$0xff]
    %v156 = vld [vmem:[#allocation5 + $0xd0] sm:$0xff]
    %v157 = vld [vmem:[#allocation5 + $0xd8] sm:$0xff]
    %v158 = vld [vmem:[#allocation5 + $0xe0] sm:$0xff]
    %v159 = vld [vmem:[#allocation5 + $0xe8] sm:$0xff]
    %v160 = vld [vmem:[#allocation5 + $0xf0] sm:$0xff]
    %v161 = vld [vmem:[#allocation5 + $0xf8] sm:$0xff]
    %v162 = vld [vmem:[#allocation5 + $0x100] sm:$0xff]
    %v163 = vld [vmem:[#allocation5 + $0x108] sm:$0xff]
    %v164 = vld [vmem:[#allocation5 + $0x110] sm:$0xff]
    %v165 = vld [vmem:[#allocation5 + $0x118] sm:$0xff]
    %v166 = vld [vmem:[#allocation5 + $0x120] sm:$0xff]
    %v167 = vld [vmem:[#allocation5 + $0x128] sm:$0xff]
    %v168 = vld [vmem:[#allocation5 + $0x130] sm:$0xff]
    %v169 = vld [vmem:[#allocation5 + $0x138] sm:$0xff]
    %v170 = vld [vmem:[#allocation5 + $0x140] sm:$0xff]
    %v171 = vld [vmem:[#allocation5 + $0x148] sm:$0xff]
    %v172 = vld [vmem:[#allocation5 + $0x150] sm:$0xff]
    %v173 = vld [vmem:[#allocation5 + $0x158] sm:$0xff]
    %v174 = vld [vmem:[#allocation5 + $0x160] sm:$0xff]
    %v175 = vld [vmem:[#allocation5 + $0x168] sm:$0xff]
    %v176 = vld [vmem:[#allocation5 + $0x170] sm:$0xff]
    %v177 = vld [vmem:[#allocation5 + $0x178] sm:$0xff]
    %v178 = vld [vmem:[#allocation5 + $0x180] sm:$0xff]
    %v179 = vld [vmem:[#allocation5 + $0x188] sm:$0xff]
    %v180 = vld [vmem:[#allocation5 + $0x190] sm:$0xff]
    %v181 = vld [vmem:[#allocation5 + $0x198] sm:$0xff]
    %v182 = vld [vmem:[#allocation5 + $0x1a0] sm:$0xff]
    %v183 = vld [vmem:[#allocation5 + $0x1a8] sm:$0xff]
    %v184 = vld [vmem:[#allocation5 + $0x1b0] sm:$0xff]
    %v185 = vld [vmem:[#allocation5 + $0x1b8] sm:$0xff]
    %v186 = vld [vmem:[#allocation5 + $0x1c0] sm:$0xff]
    %v187 = vld [vmem:[#allocation5 + $0x1c8] sm:$0xff]
    %v188 = vld [vmem:[#allocation5 + $0x1d0] sm:$0xff]
    %v189 = vld [vmem:[#allocation5 + $0x1d8] sm:$0xff]
    %v190 = vld [vmem:[#allocation5 + $0x1e0] sm:$0xff]
    %v191 = vld [vmem:[#allocation5 + $0x1e8] sm:$0xff]
    %v192 = vld [vmem:[#allocation5 + $0x1f0] sm:$0xff]
    %v193 = vld [vmem:[#allocation5 + $0x1f8] sm:$0xff]
    %v194 = vld [vmem:[#allocation5 + $0x200] sm:$0xff]
    %v195 = vld [vmem:[#allocation5 + $0x208] sm:$0xff]
    %v196 = vld [vmem:[#allocation5 + $0x210] sm:$0xff]
    %v197 = vld [vmem:[#allocation5 + $0x218] sm:$0xff]
    %v198 = vld [vmem:[#allocation5 + $0x220] sm:$0xff]
    %v199 = vld [vmem:[#allocation5 + $0x228] sm:$0xff]
    %v200 = vld [vmem:[#allocation5 + $0x230] sm:$0xff]
    %v201 = vld [vmem:[#allocation5 + $0x238] sm:$0xff]
    %v202 = vld [vmem:[#allocation5 + $0x240] sm:$0xff]
    %v203 = vld [vmem:[#allocation5 + $0x248] sm:$0xff]
    %v204 = vld [vmem:[#allocation5 + $0x250] sm:$0xff]
    %v205 = vld [vmem:[#allocation5 + $0x258] sm:$0xff]
    %v206 = vld [vmem:[#allocation5 + $0x260] sm:$0xff]
    %v207 = vld [vmem:[#allocation5 + $0x268] sm:$0xff]
    %v208 = vld [vmem:[#allocation5 + $0x270] sm:$0xff]
    %v209 = vld [vmem:[#allocation5 + $0x278] sm:$0xff]
    %v210 = vld [vmem:[#allocation5 + $0x280] sm:$0xff]
    %v211 = vld [vmem:[#allocation5 + $0x288] sm:$0xff]
    %v212 = vld [vmem:[#allocation5 + $0x290] sm:$0xff]
    %v213 = vld [vmem:[#allocation5 + $0x298] sm:$0xff]
    %v214 = vld [vmem:[#allocation5 + $0x2a0] sm:$0xff]
    %v215 = vld [vmem:[#allocation5 + $0x2a8] sm:$0xff]
    %v216 = vld [vmem:[#allocation5 + $0x2b0] sm:$0xff]
    %v217 = vld [vmem:[#allocation5 + $0x2b8] sm:$0xff]
    %v218 = vld [vmem:[#allocation5 + $0x2c0] sm:$0xff]
    %v219 = vld [vmem:[#allocation5 + $0x2c8] sm:$0xff]
    %v220 = vld [vmem:[#allocation5 + $0x2d0] sm:$0xff]
    %v221 = vld [vmem:[#allocation5 + $0x2d8] sm:$0xff]
    %v222 = vld [vmem:[#allocation5 + $0x2e0] sm:$0xff]
    %v223 = vld [vmem:[#allocation5 + $0x2e8] sm:$0xff]
    %v224 = vld [vmem:[#allocation5 + $0x2f0] sm:$0xff]
    %v225 = vld [vmem:[#allocation5 + $0x2f8] sm:$0xff]
    %v226 = vld [vmem:[#allocation5 + $0x300] sm:$0xff]
    %v227 = vld [vmem:[#allocation5 + $0x308] sm:$0xff]
    %v228 = vld [vmem:[#allocation5 + $0x310] sm:$0xff]
    %v229 = vld [vmem:[#allocation5 + $0x318] sm:$0xff]
    %v230 = vld [vmem:[#allocation5 + $0x320] sm:$0xff]
    %v231 = vld [vmem:[#allocation5 + $0x328] sm:$0xff]
    %v232 = vld [vmem:[#allocation5 + $0x330] sm:$0xff]
    %v233 = vld [vmem:[#allocation5 + $0x338] sm:$0xff]
    %v234 = vld [vmem:[#allocation5 + $0x340] sm:$0xff]
    %v235 = vld [vmem:[#allocation5 + $0x348] sm:$0xff]
    %v236 = vld [vmem:[#allocation5 + $0x350] sm:$0xff]
    %v237 = vld [vmem:[#allocation5 + $0x358] sm:$0xff]
    %v238 = vld [vmem:[#allocation5 + $0x360] sm:$0xff]
    %v239 = vld [vmem:[#allocation5 + $0x368] sm:$0xff]
    %v240 = vld [vmem:[#allocation5 + $0x370] sm:$0xff]
    %v241 = vld [vmem:[#allocation5 + $0x378] sm:$0xff]
    %v242 = vld [vmem:[#allocation5 + $0x380] sm:$0xff]
    %v243 = vld [vmem:[#allocation5 + $0x388] sm:$0xff]
    %v244 = vld [vmem:[#allocation5 + $0x390] sm:$0xff]
    %v245 = vld [vmem:[#allocation5 + $0x398] sm:$0xff]
    %v246 = vld [vmem:[#allocation5 + $0x3a0] sm:$0xff]
    %v247 = vld [vmem:[#allocation5 + $0x3a8] sm:$0xff]
    %v248 = vld [vmem:[#allocation5 + $0x3b0] sm:$0xff]
    %v249 = vld [vmem:[#allocation5 + $0x3b8] sm:$0xff]
    %v250 = vld [vmem:[#allocation5 + $0x3c0] sm:$0xff]
    %v251 = vld [vmem:[#allocation5 + $0x3c8] sm:$0xff]
    %v252 = vld [vmem:[#allocation5 + $0x3d0] sm:$0xff]
    %v253 = vld [vmem:[#allocation5 + $0x3d8] sm:$0xff]
    %v254 = vld [vmem:[#allocation5 + $0x3e0] sm:$0xff]
    %v255 = vld [vmem:[#allocation5 + $0x3e8] sm:$0xff]
    %v256 = vld [vmem:[#allocation5 + $0x3f0] sm:$0xff]
    %v257 = vld [vmem:[#allocation5 + $0x3f8] sm:$0xff]
    %v258 = vld [vmem:[#allocation5 + $0x400] sm:$0xff]
    %v259 = vld [vmem:[#allocation5 + $0x408] sm:$0xff]
    %v260 = vld [vmem:[#allocation5 + $0x410] sm:$0xff]
    %v261 = vld [vmem:[#allocation5 + $0x418] sm:$0xff]
    %v262 = vld [vmem:[#allocation5 + $0x420] sm:$0xff]
    %v263 = vld [vmem:[#allocation5 + $0x428] sm:$0xff]
    %v264 = vld [vmem:[#allocation5 + $0x430] sm:$0xff]
    %v265 = vld [vmem:[#allocation5 + $0x438] sm:$0xff]
    %v266 = vld [vmem:[#allocation5 + $0x440] sm:$0xff]
    %v267 = vld [vmem:[#allocation5 + $0x448] sm:$0xff]
    %v268 = vld [vmem:[#allocation5 + $0x450] sm:$0xff]
    %v269 = vld [vmem:[#allocation5 + $0x458] sm:$0xff]
    %v270 = vld [vmem:[#allocation5 + $0x460] sm:$0xff]
    %v271 = vld [vmem:[#allocation5 + $0x468] sm:$0xff]
    %v272 = vld [vmem:[#allocation5 + $0x470] sm:$0xff]
    %v273 = vld [vmem:[#allocation5 + $0x478] sm:$0xff]
    %v274 = vld [vmem:[#allocation5 + $0x480] sm:$0xff]
    %v275 = vld [vmem:[#allocation5 + $0x488] sm:$0xff]
    %v276 = vld [vmem:[#allocation5 + $0x490] sm:$0xff]
    %v277 = vld [vmem:[#allocation5 + $0x498] sm:$0xff]
    %v278 = vld [vmem:[#allocation5 + $0x4a0] sm:$0xff]
    %v279 = vld [vmem:[#allocation5 + $0x4a8] sm:$0xff]
    %v280 = vld [vmem:[#allocation5 + $0x4b0] sm:$0xff]
    %v281 = vld [vmem:[#allocation5 + $0x4b8] sm:$0xff]
    %v282 = vld [vmem:[#allocation5 + $0x4c0] sm:$0xff]
    %v283 = vld [vmem:[#allocation5 + $0x4c8] sm:$0xff]
    %v284 = vld [vmem:[#allocation5 + $0x4d0] sm:$0xff]
    %v285 = vld [vmem:[#allocation5 + $0x4d8] sm:$0xff]
    %v286 = vld [vmem:[#allocation5 + $0x4e0] sm:$0xff]
    %v287 = vld [vmem:[#allocation5 + $0x4e8] sm:$0xff]
    %v288 = vld [vmem:[#allocation5 + $0x4f0] sm:$0xff]
    %v289 = vld [vmem:[#allocation5 + $0x4f8] sm:$0xff]
    %v290 = vld [vmem:[#allocation5 + $0x500] sm:$0xff]
    %v291 = vld [vmem:[#allocation5 + $0x508] sm:$0xff]
    %v292 = vld [vmem:[#allocation5 + $0x510] sm:$0xff]
    %v293 = vld [vmem:[#allocation5 + $0x518] sm:$0xff]
    %v294 = vld [vmem:[#allocation5 + $0x520] sm:$0xff]
    %v295 = vld [vmem:[#allocation5 + $0x528] sm:$0xff]
    %v296 = vld [vmem:[#allocation5 + $0x530] sm:$0xff]
    %v297 = vld [vmem:[#allocation5 + $0x538] sm:$0xff]
    %v298 = vld [vmem:[#allocation5 + $0x540] sm:$0xff]
    %v299 = vld [vmem:[#allocation5 + $0x548] sm:$0xff]
    %v300 = vld [vmem:[#allocation5 + $0x550] sm:$0xff]
    %v301 = vld [vmem:[#allocation5 + $0x558] sm:$0xff]
    %v302 = vld [vmem:[#allocation5 + $0x560] sm:$0xff]
    %v303 = vld [vmem:[#allocation5 + $0x568] sm:$0xff]
    %v304 = vld [vmem:[#allocation5 + $0x570] sm:$0xff]
    %v305 = vld [vmem:[#allocation5 + $0x578] sm:$0xff]
    %v306 = vld [vmem:[#allocation5 + $0x580] sm:$0xff]
    %v307 = vld [vmem:[#allocation5 + $0x588] sm:$0xff]
    %v308 = vld [vmem:[#allocation5 + $0x590] sm:$0xff]
    %v309 = vld [vmem:[#allocation5 + $0x598] sm:$0xff]
    %v310 = vld [vmem:[#allocation5 + $0x5a0] sm:$0xff]
    %v311 = vld [vmem:[#allocation5 + $0x5a8] sm:$0xff]
    %v312 = vld [vmem:[#allocation5 + $0x5b0] sm:$0xff]
    %v313 = vld [vmem:[#allocation5 + $0x5b8] sm:$0xff]
    %v314 = vld [vmem:[#allocation5 + $0x5c0] sm:$0xff]
    %v315 = vld [vmem:[#allocation5 + $0x5c8] sm:$0xff]
    %v316 = vld [vmem:[#allocation5 + $0x5d0] sm:$0xff]
    %v317 = vld [vmem:[#allocation5 + $0x5d8] sm:$0xff]
    %v318 = vld [vmem:[#allocation5 + $0x5e0] sm:$0xff]
    %v319 = vld [vmem:[#allocation5 + $0x5e8] sm:$0xff]
    %v320 = vld [vmem:[#allocation5 + $0x5f0] sm:$0xff]
    %v321 = vld [vmem:[#allocation5 + $0x5f8] sm:$0xff]
    %v322 = vld [vmem:[#allocation5 + $0x600] sm:$0xff]
    %v323 = vld [vmem:[#allocation5 + $0x608] sm:$0xff]
    %v324 = vld [vmem:[#allocation5 + $0x610] sm:$0xff]
    %v325 = vld [vmem:[#allocation5 + $0x618] sm:$0xff]
    %v326 = vld [vmem:[#allocation5 + $0x620] sm:$0xff]
    %v327 = vld [vmem:[#allocation5 + $0x628] sm:$0xff]
    %v328 = vld [vmem:[#allocation5 + $0x630] sm:$0xff]
    %v329 = vld [vmem:[#allocation5 + $0x638] sm:$0xff]
    %v330 = vld [vmem:[#allocation5 + $0x640] sm:$0xff]
    %v331 = vld [vmem:[#allocation5 + $0x648] sm:$0xff]
    %v332 = vld [vmem:[#allocation5 + $0x650] sm:$0xff]
    %v333 = vld [vmem:[#allocation5 + $0x658] sm:$0xff]
    %v334 = vld [vmem:[#allocation5 + $0x660] sm:$0xff]
    %v335 = vld [vmem:[#allocation5 + $0x668] sm:$0xff]
    %v336 = vld [vmem:[#allocation5 + $0x670] sm:$0xff]
    %v337 = vld [vmem:[#allocation5 + $0x678] sm:$0xff]
    %v338 = vld [vmem:[#allocation5 + $0x680] sm:$0xff]
    %v339 = vld [vmem:[#allocation5 + $0x688] sm:$0xff]
    %v340 = vld [vmem:[#allocation5 + $0x690] sm:$0xff]
    %v341 = vld [vmem:[#allocation5 + $0x698] sm:$0xff]
    %v342 = vld [vmem:[#allocation5 + $0x6a0] sm:$0xff]
    %v343 = vld [vmem:[#allocation5 + $0x6a8] sm:$0xff]
    %v344 = vld [vmem:[#allocation5 + $0x6b0] sm:$0xff]
    %v345 = vld [vmem:[#allocation5 + $0x6b8] sm:$0xff]
    %v346 = vld [vmem:[#allocation5 + $0x6c0] sm:$0xff]
    %v347 = vld [vmem:[#allocation5 + $0x6c8] sm:$0xff]
    %v348 = vld [vmem:[#allocation5 + $0x6d0] sm:$0xff]
    %v349 = vld [vmem:[#allocation5 + $0x6d8] sm:$0xff]
    %v350 = vld [vmem:[#allocation5 + $0x6e0] sm:$0xff]
    %v351 = vld [vmem:[#allocation5 + $0x6e8] sm:$0xff]
    %v352 = vld [vmem:[#allocation5 + $0x6f0] sm:$0xff]
    %v353 = vld [vmem:[#allocation5 + $0x6f8] sm:$0xff]
    %v354 = vld [vmem:[#allocation5 + $0x700] sm:$0xff]
    %v355 = vld [vmem:[#allocation5 + $0x708] sm:$0xff]
    %v356 = vld [vmem:[#allocation5 + $0x710] sm:$0xff]
    %v357 = vld [vmem:[#allocation5 + $0x718] sm:$0xff]
    %v358 = vld [vmem:[#allocation5 + $0x720] sm:$0xff]
    %v359 = vld [vmem:[#allocation5 + $0x728] sm:$0xff]
    %v360 = vld [vmem:[#allocation5 + $0x730] sm:$0xff]
    %v361 = vld [vmem:[#allocation5 + $0x738] sm:$0xff]
    %v362 = vld [vmem:[#allocation5 + $0x740] sm:$0xff]
    %v363 = vld [vmem:[#allocation5 + $0x748] sm:$0xff]
    %v364 = vld [vmem:[#allocation5 + $0x750] sm:$0xff]
    %v365 = vld [vmem:[#allocation5 + $0x758] sm:$0xff]
    %v366 = vld [vmem:[#allocation5 + $0x760] sm:$0xff]
    %v367 = vld [vmem:[#allocation5 + $0x768] sm:$0xff]
    %v368 = vld [vmem:[#allocation5 + $0x770] sm:$0xff]
    %v369 = vld [vmem:[#allocation5 + $0x778] sm:$0xff]
    %v370 = vld [vmem:[#allocation5 + $0x780] sm:$0xff]
    %v371 = vld [vmem:[#allocation5 + $0x788] sm:$0xff]
    %v372 = vld [vmem:[#allocation5 + $0x790] sm:$0xff]
    %v373 = vld [vmem:[#allocation5 + $0x798] sm:$0xff]
    %v374 = vld [vmem:[#allocation5 + $0x7a0] sm:$0xff]
    %v375 = vld [vmem:[#allocation5 + $0x7a8] sm:$0xff]
    %v376 = vld [vmem:[#allocation5 + $0x7b0] sm:$0xff]
    %v377 = vld [vmem:[#allocation5 + $0x7b8] sm:$0xff]
    %v378 = vld [vmem:[#allocation5 + $0x7c0] sm:$0xff]
    %v379 = vld [vmem:[#allocation5 + $0x7c8] sm:$0xff]
    %v380 = vld [vmem:[#allocation5 + $0x7d0] sm:$0xff]
    %v381 = vld [vmem:[#allocation5 + $0x7d8] sm:$0xff]
    %v382 = vld [vmem:[#allocation5 + $0x7e0] sm:$0xff]
    %v383 = vld [vmem:[#allocation5 + $0x7e8] sm:$0xff]
    %v384 = vld [vmem:[#allocation5 + $0x7f0] sm:$0xff]
    %v385 = vld [vmem:[#allocation5 + $0x7f8] sm:$0xff]
    %v386 = vld [vmem:[#allocation5 + $0x800] sm:$0xff]
    %v387 = vld [vmem:[#allocation5 + $0x808] sm:$0xff]
    %v388 = vld [vmem:[#allocation5 + $0x810] sm:$0xff]
    %v389 = vld [vmem:[#allocation5 + $0x818] sm:$0xff]
    %v390 = vld [vmem:[#allocation5 + $0x820] sm:$0xff]
    %v391 = vld [vmem:[#allocation5 + $0x828] sm:$0xff]
    %v392 = vld [vmem:[#allocation5 + $0x830] sm:$0xff]
    %v393 = vld [vmem:[#allocation5 + $0x838] sm:$0xff]
    %v394 = vld [vmem:[#allocation5 + $0x840] sm:$0xff]
    %v395 = vld [vmem:[#allocation5 + $0x848] sm:$0xff]
    %v396 = vld [vmem:[#allocation5 + $0x850] sm:$0xff]
    %v397 = vld [vmem:[#allocation5 + $0x858] sm:$0xff]
    %v398 = vld [vmem:[#allocation5 + $0x860] sm:$0xff]
    %v399 = vld [vmem:[#allocation5 + $0x868] sm:$0xff]
    %v400 = vld [vmem:[#allocation5 + $0x870] sm:$0xff]
    %v401 = vld [vmem:[#allocation5 + $0x878] sm:$0xff]
    %v402 = vld [vmem:[#allocation5 + $0x880] sm:$0xff]
    %v403 = vld [vmem:[#allocation5 + $0x888] sm:$0xff]
    %v404 = vld [vmem:[#allocation5 + $0x890] sm:$0xff]
    %v405 = vld [vmem:[#allocation5 + $0x898] sm:$0xff]
    %v406 = vld [vmem:[#allocation5 + $0x8a0] sm:$0xff]
    %v407 = vld [vmem:[#allocation5 + $0x8a8] sm:$0xff]
    %v408 = vld [vmem:[#allocation5 + $0x8b0] sm:$0xff]
    %v409 = vld [vmem:[#allocation5 + $0x8b8] sm:$0xff]
    %v410 = vld [vmem:[#allocation5 + $0x8c0] sm:$0xff]
    %v411 = vld [vmem:[#allocation5 + $0x8c8] sm:$0xff]
    %v412 = vld [vmem:[#allocation5 + $0x8d0] sm:$0xff]
    %v413 = vld [vmem:[#allocation5 + $0x8d8] sm:$0xff]
    %v414 = vld [vmem:[#allocation5 + $0x8e0] sm:$0xff]
    %v415 = vld [vmem:[#allocation5 + $0x8e8] sm:$0xff]
    %v416 = vld [vmem:[#allocation5 + $0x8f0] sm:$0xff]
    %v417 = vld [vmem:[#allocation5 + $0x8f8] sm:$0xff]
    %v418 = vld [vmem:[#allocation5 + $0x900] sm:$0xff]
    %v419 = vld [vmem:[#allocation5 + $0x908] sm:$0xff]
    %v420 = vld [vmem:[#allocation5 + $0x910] sm:$0xff]
    %v421 = vld [vmem:[#allocation5 + $0x918] sm:$0xff]
    %v422 = vld [vmem:[#allocation5 + $0x920] sm:$0xff]
    %v423 = vld [vmem:[#allocation5 + $0x928] sm:$0xff]
    %v424 = vld [vmem:[#allocation5 + $0x930] sm:$0xff]
    %v425 = vld [vmem:[#allocation5 + $0x938] sm:$0xff]
    %v426 = vld [vmem:[#allocation5 + $0x940] sm:$0xff]
    %v427 = vld [vmem:[#allocation5 + $0x948] sm:$0xff]
    %v428 = vld [vmem:[#allocation5 + $0x950] sm:$0xff]
    %v429 = vld [vmem:[#allocation5 + $0x958] sm:$0xff]
    %v430 = vld [vmem:[#allocation5 + $0x960] sm:$0xff]
    %v431 = vld [vmem:[#allocation5 + $0x968] sm:$0xff]
    %v432 = vld [vmem:[#allocation5 + $0x970] sm:$0xff]
    %v433 = vld [vmem:[#allocation5 + $0x978] sm:$0xff]
    %v434 = vld [vmem:[#allocation5 + $0x980] sm:$0xff]
    %v435 = vld [vmem:[#allocation5 + $0x988] sm:$0xff]
    %v436 = vld [vmem:[#allocation5 + $0x990] sm:$0xff]
    %v437 = vld [vmem:[#allocation5 + $0x998] sm:$0xff]
    %v438 = vld [vmem:[#allocation5 + $0x9a0] sm:$0xff]
    %v439 = vld [vmem:[#allocation5 + $0x9a8] sm:$0xff]
    %v440 = vld [vmem:[#allocation5 + $0x9b0] sm:$0xff]
    %v441 = vld [vmem:[#allocation5 + $0x9b8] sm:$0xff]
    %v442 = vld [vmem:[#allocation5 + $0x9c0] sm:$0xff]
    %v443 = vld [vmem:[#allocation5 + $0x9c8] sm:$0xff]
    %v444 = vld [vmem:[#allocation5 + $0x9d0] sm:$0xff]
    %v445 = vld [vmem:[#allocation5 + $0x9d8] sm:$0xff]
    %v446 = vld [vmem:[#allocation5 + $0x9e0] sm:$0xff]
    %v447 = vld [vmem:[#allocation5 + $0x9e8] sm:$0xff]
    %v448 = vld [vmem:[#allocation5 + $0x9f0] sm:$0xff]
    %v449 = vld [vmem:[#allocation5 + $0x9f8] sm:$0xff]
    %v450 = vld [vmem:[#allocation5 + $0xa00] sm:$0xff]
    %v451 = vld [vmem:[#allocation5 + $0xa08] sm:$0xff]
    %v452 = vld [vmem:[#allocation5 + $0xa10] sm:$0xff]
    %v453 = vld [vmem:[#allocation5 + $0xa18] sm:$0xff]
    %v454 = vld [vmem:[#allocation5 + $0xa20] sm:$0xff]
    %v455 = vld [vmem:[#allocation5 + $0xa28] sm:$0xff]
    %v456 = vld [vmem:[#allocation5 + $0xa30] sm:$0xff]
    %v457 = vld [vmem:[#allocation5 + $0xa38] sm:$0xff]
    %v458 = vld [vmem:[#allocation5 + $0xa40] sm:$0xff]
    %v459 = vld [vmem:[#allocation5 + $0xa48] sm:$0xff]
    %v460 = vld [vmem:[#allocation5 + $0xa50] sm:$0xff]
    %v461 = vld [vmem:[#allocation5 + $0xa58] sm:$0xff]
    %v462 = vld [vmem:[#allocation5 + $0xa60] sm:$0xff]
    %v463 = vld [vmem:[#allocation5 + $0xa68] sm:$0xff]
    %v464 = vld [vmem:[#allocation5 + $0xa70] sm:$0xff]
    %v465 = vld [vmem:[#allocation5 + $0xa78] sm:$0xff]
    %v466 = vld [vmem:[#allocation5 + $0xa80] sm:$0xff]
    %v467 = vld [vmem:[#allocation5 + $0xa88] sm:$0xff]
    %v468 = vld [vmem:[#allocation5 + $0xa90] sm:$0xff]
    %v469 = vld [vmem:[#allocation5 + $0xa98] sm:$0xff]
    %v470 = vld [vmem:[#allocation5 + $0xaa0] sm:$0xff]
    %v471 = vld [vmem:[#allocation5 + $0xaa8] sm:$0xff]
    %v472 = vld [vmem:[#allocation5 + $0xab0] sm:$0xff]
    %v473 = vld [vmem:[#allocation5 + $0xab8] sm:$0xff]
    %v474 = vld [vmem:[#allocation5 + $0xac0] sm:$0xff]
    %v475 = vld [vmem:[#allocation5 + $0xac8] sm:$0xff]
    %v476 = vld [vmem:[#allocation5 + $0xad0] sm:$0xff]
    %v477 = vld [vmem:[#allocation5 + $0xad8] sm:$0xff]
    %v478 = vld [vmem:[#allocation5 + $0xae0] sm:$0xff]
    %v479 = vld [vmem:[#allocation5 + $0xae8] sm:$0xff]
    %v480 = vld [vmem:[#allocation5 + $0xaf0] sm:$0xff]
    %v481 = vld [vmem:[#allocation5 + $0xaf8] sm:$0xff]
    %v482 = vld [vmem:[#allocation5 + $0xb00] sm:$0xff]
    %v483 = vld [vmem:[#allocation5 + $0xb08] sm:$0xff]
    %v484 = vld [vmem:[#allocation5 + $0xb10] sm:$0xff]
    %v485 = vld [vmem:[#allocation5 + $0xb18] sm:$0xff]
    %v486 = vld [vmem:[#allocation5 + $0xb20] sm:$0xff]
    %v487 = vld [vmem:[#allocation5 + $0xb28] sm:$0xff]
    %v488 = vld [vmem:[#allocation5 + $0xb30] sm:$0xff]
    %v489 = vld [vmem:[#allocation5 + $0xb38] sm:$0xff]
    %v490 = vld [vmem:[#allocation5 + $0xb40] sm:$0xff]
    %v491 = vld [vmem:[#allocation5 + $0xb48] sm:$0xff]
    %v492 = vld [vmem:[#allocation5 + $0xb50] sm:$0xff]
    %v493 = vld [vmem:[#allocation5 + $0xb58] sm:$0xff]
    %v494 = vld [vmem:[#allocation5 + $0xb60] sm:$0xff]
    %v495 = vld [vmem:[#allocation5 + $0xb68] sm:$0xff]
    %v496 = vld [vmem:[#allocation5 + $0xb70] sm:$0xff]
    %v497 = vld [vmem:[#allocation5 + $0xb78] sm:$0xff]
    %v498 = vld [vmem:[#allocation5 + $0xb80] sm:$0xff]
    %v499 = vld [vmem:[#allocation5 + $0xb88] sm:$0xff]
    %v500 = vld [vmem:[#allocation5 + $0xb90] sm:$0xff]
    %v501 = vld [vmem:[#allocation5 + $0xb98] sm:$0xff]
    %v502 = vld [vmem:[#allocation5 + $0xba0] sm:$0xff]
    %v503 = vld [vmem:[#allocation5 + $0xba8] sm:$0xff]
    %v504 = vld [vmem:[#allocation5 + $0xbb0] sm:$0xff]
    %v505 = vld [vmem:[#allocation5 + $0xbb8] sm:$0xff]
    %v506 = vld [vmem:[#allocation5 + $0xbc0] sm:$0xff]
    %v507 = vld [vmem:[#allocation5 + $0xbc8] sm:$0xff]
    %v508 = vld [vmem:[#allocation5 + $0xbd0] sm:$0xff]
    %v509 = vld [vmem:[#allocation5 + $0xbd8] sm:$0xff]
    %v510 = vld [vmem:[#allocation5 + $0xbe0] sm:$0xff]
    %v511 = vld [vmem:[#allocation5 + $0xbe8] sm:$0xff]
    %v512 = vld [vmem:[#allocation5 + $0xbf0] sm:$0xff]
    %v513 = vld [vmem:[#allocation5 + $0xbf8] sm:$0xff]
    %v514 = vld [vmem:[#allocation5 + $0xc00] sm:$0xff]
    %v515 = vld [vmem:[#allocation5 + $0xc08] sm:$0xff]
    %v516 = vld [vmem:[#allocation5 + $0xc10] sm:$0xff]
    %v517 = vld [vmem:[#allocation5 + $0xc18] sm:$0xff]
    %v518 = vld [vmem:[#allocation5 + $0xc20] sm:$0xff]
    %v519 = vld [vmem:[#allocation5 + $0xc28] sm:$0xff]
    %v520 = vld [vmem:[#allocation5 + $0xc30] sm:$0xff]
    %v521 = vld [vmem:[#allocation5 + $0xc38] sm:$0xff]
    %v522 = vld [vmem:[#allocation7] sm:$0xf]
    %v524 = vlaneseq
    %v525 = vshrl.u32 %v524, 7
    %v526 = vsub.s32 0, %v525
    %v527 = vrot.slane %v522, %v526
    %v528 = vlaneseq
    %v529 = vshrl.u32 %v528, 7
    %v530 = vsub.s32 1, %v529
    %v531 = vrot.slane %v522, %v530
    %v532 = vlaneseq
    %v533 = vshrl.u32 %v532, 7
    %v534 = vsub.s32 2, %v533
    %v535 = vrot.slane %v522, %v534
    %v536 = vlaneseq
    %v537 = vshrl.u32 %v536, 7
    %v538 = vsub.s32 3, %v537
    %v539 = vrot.slane %v522, %v538
    %vm544 = vcmask 130048
    %v546 = vsel %vm544, %v122, 0
    %v549 = vsel %vm544, %v129, 0
    %551 = vmatprep.subr.mxu0 %v131
    %552 = vmatpush1.msra.mxu0 %v130
    %553 = vmatprep.subr.mxu0 %v135
    %554 = vmatpush1.msra.mxu0 %v134
    %555 = vmatprep.subr.mxu0 %v139
    %556 = vmatpush1.msra.mxu0 %v138
    %557 = vmatprep.subr.mxu0 %v143
    %558 = vmatpush1.msra.mxu0 %v142
    %559 = vmatprep.subr.mxu0 %v147
    %560 = vmatpush1.msra.mxu0 %v146
    %561 = vmatprep.subr.mxu0 %v151
    %562 = vmatpush1.msra.mxu0 %v150
    %563 = vmatprep.subr.mxu0 %v155
    %564 = vmatpush1.msra.mxu0 %v154
    %565 = vmatprep.subr.mxu0 %v159
    %566 = vmatpush1.msra.mxu0 %v158
    %567 = vmatprep.subr.mxu0 %v163
    %568 = vmatpush1.msra.mxu0 %v162
    %569 = vmatprep.subr.mxu0 %v167
    %570 = vmatpush1.msra.mxu0 %v166
    %571 = vmatprep.subr.mxu0 %v171
    %572 = vmatpush1.msra.mxu0 %v170
    %573 = vmatprep.subr.mxu0 %v175
    %574 = vmatpush1.msra.mxu0 %v174
    %575 = vmatprep.subr.mxu0 %v179
    %576 = vmatpush1.msra.mxu0 %v178
    %577 = vmatprep.subr.mxu0 %v183
    %578 = vmatpush1.msra.mxu0 %v182
    %579 = vmatprep.subr.mxu0 %v187
    %580 = vmatpush1.msra.mxu0 %v186
    %581 = vmatprep.subr.mxu0 %v191
    %582 = vmatpush1.msra.mxu0 %v190
    %583 = vmatprep.subr.mxu0 %v195
    %584 = vmatpush1.msra.mxu0 %v194
    %585 = vmatprep.subr.mxu0 %v199
    %586 = vmatpush1.msra.mxu0 %v198
    %587 = vmatprep.subr.mxu0 %v203
    %588 = vmatpush1.msra.mxu0 %v202
    %589 = vmatprep.subr.mxu0 %v207
    %590 = vmatpush1.msra.mxu0 %v206
    %591 = vmatprep.subr.mxu0 %v211
    %592 = vmatpush1.msra.mxu0 %v210
    %593 = vmatprep.subr.mxu0 %v215
    %594 = vmatpush1.msra.mxu0 %v214
    %595 = vmatprep.subr.mxu0 %v219
    %596 = vmatpush1.msra.mxu0 %v218
    %597 = vmatprep.subr.mxu0 %v223
    %598 = vmatpush1.msra.mxu0 %v222
    %599 = vmatprep.subr.mxu0 %v227
    %600 = vmatpush1.msra.mxu0 %v226
    %601 = vmatprep.subr.mxu0 %v231
    %602 = vmatpush1.msra.mxu0 %v230
    %603 = vmatprep.subr.mxu0 %v235
    %604 = vmatpush1.msra.mxu0 %v234
    %605 = vmatprep.subr.mxu0 %v239
    %606 = vmatpush1.msra.mxu0 %v238
    %607 = vmatprep.subr.mxu0 %v243
    %608 = vmatpush1.msra.mxu0 %v242
    %609 = vmatprep.subr.mxu0 %v247
    %610 = vmatpush1.msra.mxu0 %v246
    %611 = vmatprep.subr.mxu0 %v251
    %612 = vmatpush1.msra.mxu0 %v250
    %613 = vmatprep.subr.mxu0 %v255
    %614 = vmatpush1.msra.mxu0 %v254
    %615 = vmatprep.mubr.f32.mxu0 %v117
    %616 = vmatmul.mubr.f32.gmra.mrb[0].mxu0 %v116
    %v617 = vpop.f32.mrb[0].mxu0
    %v618 = vadd.f32 %v527, %v617
    %v619 = vpop.f32.mrb[0].mxu0
    %v620 = vadd.f32 %v531, %v619
    %621 = vmatprep.mubr.f32.mxu0 %v124
    %622 = vmatmul.mubr.f32.gmra.mrb[0].mxu0 %v123
    %v623 = vpop.f32.mrb[0].mxu0
    %v624 = vadd.f32 %v527, %v623
    %v625 = vpop.f32.mrb[0].mxu0
    %v626 = vadd.f32 %v531, %v625
    %627 = vdwg.mxu0
    %628 = vmatprep.subr.mxu0 %v259
    %629 = vmatpush1.msra.mxu0 %v258
    %630 = vmatprep.subr.mxu0 %v263
    %631 = vmatpush1.msra.mxu0 %v262
    %632 = vmatprep.subr.mxu0 %v267
    %633 = vmatpush1.msra.mxu0 %v266
    %634 = vmatprep.subr.mxu0 %v271
    %635 = vmatpush1.msra.mxu0 %v270
    %636 = vmatprep.subr.mxu0 %v275
    %637 = vmatpush1.msra.mxu0 %v274
    %638 = vmatprep.subr.mxu0 %v279
    %639 = vmatpush1.msra.mxu0 %v278
    %640 = vmatprep.subr.mxu0 %v283
    %641 = vmatpush1.msra.mxu0 %v282
    %642 = vmatprep.subr.mxu0 %v287
    %643 = vmatpush1.msra.mxu0 %v286
    %644 = vmatprep.subr.mxu0 %v291
    %645 = vmatpush1.msra.mxu0 %v290
    %646 = vmatprep.subr.mxu0 %v295
    %647 = vmatpush1.msra.mxu0 %v294
    %648 = vmatprep.subr.mxu0 %v299
    %649 = vmatpush1.msra.mxu0 %v298
    %650 = vmatprep.subr.mxu0 %v303
    %651 = vmatpush1.msra.mxu0 %v302
    %652 = vmatprep.subr.mxu0 %v307
    %653 = vmatpush1.msra.mxu0 %v306
    %654 = vmatprep.subr.mxu0 %v311
    %655 = vmatpush1.msra.mxu0 %v310
    %656 = vmatprep.subr.mxu0 %v315
    %657 = vmatpush1.msra.mxu0 %v314
    %658 = vmatprep.subr.mxu0 %v319
    %659 = vmatpush1.msra.mxu0 %v318
    %660 = vmatprep.subr.mxu0 %v323
    %661 = vmatpush1.msra.mxu0 %v322
    %662 = vmatprep.subr.mxu0 %v327
    %663 = vmatpush1.msra.mxu0 %v326
    %664 = vmatprep.subr.mxu0 %v331
    %665 = vmatpush1.msra.mxu0 %v330
    %666 = vmatprep.subr.mxu0 %v335
    %667 = vmatpush1.msra.mxu0 %v334
    %668 = vmatprep.subr.mxu0 %v339
    %669 = vmatpush1.msra.mxu0 %v338
    %670 = vmatprep.subr.mxu0 %v343
    %671 = vmatpush1.msra.mxu0 %v342
    %672 = vmatprep.subr.mxu0 %v347
    %673 = vmatpush1.msra.mxu0 %v346
    %674 = vmatprep.subr.mxu0 %v351
    %675 = vmatpush1.msra.mxu0 %v350
    %676 = vmatprep.subr.mxu0 %v355
    %677 = vmatpush1.msra.mxu0 %v354
    %678 = vmatprep.subr.mxu0 %v359
    %679 = vmatpush1.msra.mxu0 %v358
    %680 = vmatprep.subr.mxu0 %v363
    %681 = vmatpush1.msra.mxu0 %v362
    %682 = vmatprep.subr.mxu0 %v367
    %683 = vmatpush1.msra.mxu0 %v366
    %684 = vmatprep.subr.mxu0 %v371
    %685 = vmatpush1.msra.mxu0 %v370
    %686 = vmatprep.subr.mxu0 %v375
    %687 = vmatpush1.msra.mxu0 %v374
    %688 = vmatprep.subr.mxu0 %v379
    %689 = vmatpush1.msra.mxu0 %v378
    %690 = vmatprep.subr.mxu0 %v383
    %691 = vmatpush1.msra.mxu0 %v382
    %692 = vmatprep.mubr.f32.mxu0 %v119
    %693 = vmatmul.mubr.f32.gmra.mrb[0].mxu0 %v118
    %v694 = vpop.f32.mrb[0].mxu0
    %v695 = vadd.f32 %v618, %v694
    %v696 = vpop.f32.mrb[0].mxu0
    %v697 = vadd.f32 %v620, %v696
    %698 = vmatprep.mubr.f32.mxu0 %v126
    %699 = vmatmul.mubr.f32.gmra.mrb[0].mxu0 %v125
    %v700 = vpop.f32.mrb[0].mxu0
    %v701 = vadd.f32 %v624, %v700
    %v702 = vpop.f32.mrb[0].mxu0
    %v703 = vadd.f32 %v626, %v702
    %704 = vdwg.mxu0
    %705 = vmatprep.subr.mxu0 %v387
    %706 = vmatpush1.msra.mxu0 %v386
    %707 = vmatprep.subr.mxu0 %v391
    %708 = vmatpush1.msra.mxu0 %v390
    %709 = vmatprep.subr.mxu0 %v395
    %710 = vmatpush1.msra.mxu0 %v394
    %711 = vmatprep.subr.mxu0 %v399
    %712 = vmatpush1.msra.mxu0 %v398
    %713 = vmatprep.subr.mxu0 %v403
    %714 = vmatpush1.msra.mxu0 %v402
    %715 = vmatprep.subr.mxu0 %v407
    %716 = vmatpush1.msra.mxu0 %v406
    %717 = vmatprep.subr.mxu0 %v411
    %718 = vmatpush1.msra.mxu0 %v410
    %719 = vmatprep.subr.mxu0 %v415
    %720 = vmatpush1.msra.mxu0 %v414
    %721 = vmatprep.subr.mxu0 %v419
    %722 = vmatpush1.msra.mxu0 %v418
    %723 = vmatprep.subr.mxu0 %v423
    %724 = vmatpush1.msra.mxu0 %v422
    %725 = vmatprep.subr.mxu0 %v427
    %726 = vmatpush1.msra.mxu0 %v426
    %727 = vmatprep.subr.mxu0 %v431
    %728 = vmatpush1.msra.mxu0 %v430
    %729 = vmatprep.subr.mxu0 %v435
    %730 = vmatpush1.msra.mxu0 %v434
    %731 = vmatprep.subr.mxu0 %v439
    %732 = vmatpush1.msra.mxu0 %v438
    %733 = vmatprep.subr.mxu0 %v443
    %734 = vmatpush1.msra.mxu0 %v442
    %735 = vmatprep.subr.mxu0 %v447
    %736 = vmatpush1.msra.mxu0 %v446
    %737 = vmatprep.subr.mxu0 %v451
    %738 = vmatpush1.msra.mxu0 %v450
    %739 = vmatprep.subr.mxu0 %v455
    %740 = vmatpush1.msra.mxu0 %v454
    %741 = vmatprep.subr.mxu0 %v459
    %742 = vmatpush1.msra.mxu0 %v458
    %743 = vmatprep.subr.mxu0 %v463
    %744 = vmatpush1.msra.mxu0 %v462
    %745 = vmatprep.subr.mxu0 %v467
    %746 = vmatpush1.msra.mxu0 %v466
    %747 = vmatprep.subr.mxu0 %v471
    %748 = vmatpush1.msra.mxu0 %v470
    %749 = vmatprep.subr.mxu0 %v475
    %750 = vmatpush1.msra.mxu0 %v474
    %751 = vmatprep.subr.mxu0 %v479
    %752 = vmatpush1.msra.mxu0 %v478
    %753 = vmatprep.subr.mxu0 %v483
    %754 = vmatpush1.msra.mxu0 %v482
    %755 = vmatprep.subr.mxu0 %v487
    %756 = vmatpush1.msra.mxu0 %v486
    %757 = vmatprep.subr.mxu0 %v491
    %758 = vmatpush1.msra.mxu0 %v490
    %759 = vmatprep.subr.mxu0 %v495
    %760 = vmatpush1.msra.mxu0 %v494
    %761 = vmatprep.subr.mxu0 %v499
    %762 = vmatpush1.msra.mxu0 %v498
    %763 = vmatprep.subr.mxu0 %v503
    %764 = vmatpush1.msra.mxu0 %v502
    %765 = vmatprep.subr.mxu0 %v507
    %766 = vmatpush1.msra.mxu0 %v506
    %767 = vmatprep.subr.mxu0 %v511
    %768 = vmatpush1.msra.mxu0 %v510
    %769 = vmatprep.mubr.f32.mxu0 %v121
    %770 = vmatmul.mubr.f32.gmra.mrb[0].mxu0 %v120
    %v771 = vpop.f32.mrb[0].mxu0
    %v772 = vadd.f32 %v695, %v771
    %v773 = vpop.f32.mrb[0].mxu0
    %v774 = vadd.f32 %v697, %v773
    %775 = vmatprep.mubr.f32.mxu0 %v128
    %776 = vmatmul.mubr.f32.gmra.mrb[0].mxu0 %v127
    %v777 = vpop.f32.mrb[0].mxu0
    %v778 = vadd.f32 %v701, %v777
    %v779 = vpop.f32.mrb[0].mxu0
    %v780 = vadd.f32 %v703, %v779
    %781 = vdwg.mxu0
    %782 = vmatprep.subr.mxu0 %v515
    %783 = vmatpush1.msra.mxu0 %v514
    %784 = vmatprep.subr.mxu0 %v519
    %785 = vmatpush1.msra.mxu0 %v518
    %786 = vmatprep.subr.mxu0 0.0
    %787 = vmatpush1.msra.mxu0 0.0
    %788 = vmatprep.subr.mxu0 0.0
    %789 = vmatpush1.msra.mxu0 0.0
    %790 = vmatprep.subr.mxu0 0.0
    %791 = vmatpush1.msra.mxu0 0.0
    %792 = vmatprep.subr.mxu0 0.0
    %793 = vmatpush1.msra.mxu0 0.0
    %794 = vmatprep.subr.mxu0 0.0
    %795 = vmatpush1.msra.mxu0 0.0
    %796 = vmatprep.subr.mxu0 0.0
    %797 = vmatpush1.msra.mxu0 0.0
    %798 = vmatprep.subr.mxu0 0.0
    %799 = vmatpush1.msra.mxu0 0.0
    %800 = vmatprep.subr.mxu0 0.0
    %801 = vmatpush1.msra.mxu0 0.0
    %802 = vmatprep.subr.mxu0 0.0
    %803 = vmatpush1.msra.mxu0 0.0
    %804 = vmatprep.subr.mxu0 0.0
    %805 = vmatpush1.msra.mxu0 0.0
    %806 = vmatprep.subr.mxu0 0.0
    %807 = vmatpush1.msra.mxu0 0.0
    %808 = vmatprep.subr.mxu0 0.0
    %809 = vmatpush1.msra.mxu0 0.0
    %810 = vmatprep.subr.mxu0 0.0
    %811 = vmatpush1.msra.mxu0 0.0
    %812 = vmatprep.subr.mxu0 0.0
    %813 = vmatpush1.msra.mxu0 0.0
    %814 = vmatprep.subr.mxu0 0.0
    %815 = vmatpush1.msra.mxu0 0.0
    %816 = vmatprep.subr.mxu0 0.0
    %817 = vmatpush1.msra.mxu0 0.0
    %818 = vmatprep.subr.mxu0 0.0
    %819 = vmatpush1.msra.mxu0 0.0
    %820 = vmatprep.subr.mxu0 0.0
    %821 = vmatpush1.msra.mxu0 0.0
    %822 = vmatprep.subr.mxu0 0.0
    %823 = vmatpush1.msra.mxu0 0.0
    %824 = vmatprep.subr.mxu0 0.0
    %825 = vmatpush1.msra.mxu0 0.0
    %826 = vmatprep.subr.mxu0 0.0
    %827 = vmatpush1.msra.mxu0 0.0
    %828 = vmatprep.subr.mxu0 0.0
    %829 = vmatpush1.msra.mxu0 0.0
    %830 = vmatprep.subr.mxu0 0.0
    %831 = vmatpush1.msra.mxu0 0.0
    %832 = vmatprep.subr.mxu0 0.0
    %833 = vmatpush1.msra.mxu0 0.0
    %834 = vmatprep.subr.mxu0 0.0
    %835 = vmatpush1.msra.mxu0 0.0
    %836 = vmatprep.subr.mxu0 0.0
    %837 = vmatpush1.msra.mxu0 0.0
    %838 = vmatprep.subr.mxu0 0.0
    %839 = vmatpush1.msra.mxu0 0.0
    %840 = vmatprep.subr.mxu0 0.0
    %841 = vmatpush1.msra.mxu0 0.0
    %842 = vmatprep.subr.mxu0 0.0
    %843 = vmatpush1.msra.mxu0 0.0
    %844 = vmatprep.subr.mxu0 0.0
    %845 = vmatpush1.msra.mxu0 0.0
    %846 = vmatprep.mubr.f32.mxu0 0.0
    %847 = vmatmul.mubr.f32.gmra.mrb[0].mxu0 %v546
    %v848 = vpop.f32.mrb[0].mxu0
    %v849 = vadd.f32 %v772, %v848
    %v850 = vpop.f32.mrb[0].mxu0
    %v851 = vadd.f32 %v774, %v850
    %852 = vmatprep.mubr.f32.mxu0 0.0
    %853 = vmatmul.mubr.f32.gmra.mrb[0].mxu0 %v549
    %v854 = vpop.f32.mrb[0].mxu0
    %v855 = vadd.f32 %v778, %v854
    %v856 = vpop.f32.mrb[0].mxu0
    %v857 = vadd.f32 %v780, %v856
    %858 = vdwg.mxu0
    %859 = vmatprep.subr.mxu0 %v133
    %860 = vmatpush1.msra.mxu0 %v132
    %861 = vmatprep.subr.mxu0 %v137
    %862 = vmatpush1.msra.mxu0 %v136
    %863 = vmatprep.subr.mxu0 %v141
    %864 = vmatpush1.msra.mxu0 %v140
    %865 = vmatprep.subr.mxu0 %v145
    %866 = vmatpush1.msra.mxu0 %v144
    %867 = vmatprep.subr.mxu0 %v149
    %868 = vmatpush1.msra.mxu0 %v148
    %869 = vmatprep.subr.mxu0 %v153
    %870 = vmatpush1.msra.mxu0 %v152
    %871 = vmatprep.subr.mxu0 %v157
    %872 = vmatpush1.msra.mxu0 %v156
    %873 = vmatprep.subr.mxu0 %v161
    %874 = vmatpush1.msra.mxu0 %v160
    %875 = vmatprep.subr.mxu0 %v165
    %876 = vmatpush1.msra.mxu0 %v164
    %877 = vmatprep.subr.mxu0 %v169
    %878 = vmatpush1.msra.mxu0 %v168
    %879 = vmatprep.subr.mxu0 %v173
    %880 = vmatpush1.msra.mxu0 %v172
    %881 = vmatprep.subr.mxu0 %v177
    %882 = vmatpush1.msra.mxu0 %v176
    %883 = vmatprep.subr.mxu0 %v181
    %884 = vmatpush1.msra.mxu0 %v180
    %885 = vmatprep.subr.mxu0 %v185
    %886 = vmatpush1.msra.mxu0 %v184
    %887 = vmatprep.subr.mxu0 %v189
    %888 = vmatpush1.msra.mxu0 %v188
    %889 = vmatprep.subr.mxu0 %v193
    %890 = vmatpush1.msra.mxu0 %v192
    %891 = vmatprep.subr.mxu0 %v197
    %892 = vmatpush1.msra.mxu0 %v196
    %893 = vmatprep.subr.mxu0 %v201
    %894 = vmatpush1.msra.mxu0 %v200
    %895 = vmatprep.subr.mxu0 %v205
    %896 = vmatpush1.msra.mxu0 %v204
    %897 = vmatprep.subr.mxu0 %v209
    %898 = vmatpush1.msra.mxu0 %v208
    %899 = vmatprep.subr.mxu0 %v213
    %900 = vmatpush1.msra.mxu0 %v212
    %901 = vmatprep.subr.mxu0 %v217
    %902 = vmatpush1.msra.mxu0 %v216
    %903 = vmatprep.subr.mxu0 %v221
    %904 = vmatpush1.msra.mxu0 %v220
    %905 = vmatprep.subr.mxu0 %v225
    %906 = vmatpush1.msra.mxu0 %v224
    %907 = vmatprep.subr.mxu0 %v229
    %908 = vmatpush1.msra.mxu0 %v228
    %909 = vmatprep.subr.mxu0 %v233
    %910 = vmatpush1.msra.mxu0 %v232
    %911 = vmatprep.subr.mxu0 %v237
    %912 = vmatpush1.msra.mxu0 %v236
    %913 = vmatprep.subr.mxu0 %v241
    %914 = vmatpush1.msra.mxu0 %v240
    %915 = vmatprep.subr.mxu0 %v245
    %916 = vmatpush1.msra.mxu0 %v244
    %917 = vmatprep.subr.mxu0 %v249
    %918 = vmatpush1.msra.mxu0 %v248
    %919 = vmatprep.subr.mxu0 %v253
    %920 = vmatpush1.msra.mxu0 %v252
    %921 = vmatprep.subr.mxu0 %v257
    %922 = vmatpush1.msra.mxu0 %v256
    %923 = vmatprep.mubr.f32.mxu0 %v117
    %924 = vmatmul.mubr.f32.gmra.mrb[0].mxu0 %v116
    %v925 = vpop.f32.mrb[0].mxu0
    %v926 = vadd.f32 %v535, %v925
    %v927 = vpop.f32.mrb[0].mxu0
    %v928 = vadd.f32 %v539, %v927
    %929 = vmatprep.mubr.f32.mxu0 %v124
    %930 = vmatmul.mubr.f32.gmra.mrb[0].mxu0 %v123
    %v931 = vpop.f32.mrb[0].mxu0
    %v932 = vadd.f32 %v535, %v931
    %v933 = vpop.f32.mrb[0].mxu0
    %v934 = vadd.f32 %v539, %v933
    %935 = vdwg.mxu0
    %936 = vmatprep.subr.mxu0 %v261
    %937 = vmatpush1.msra.mxu0 %v260
    %938 = vmatprep.subr.mxu0 %v265
    %939 = vmatpush1.msra.mxu0 %v264
    %940 = vmatprep.subr.mxu0 %v269
    %941 = vmatpush1.msra.mxu0 %v268
    %942 = vmatprep.subr.mxu0 %v273
    %943 = vmatpush1.msra.mxu0 %v272
    %944 = vmatprep.subr.mxu0 %v277
    %945 = vmatpush1.msra.mxu0 %v276
    %946 = vmatprep.subr.mxu0 %v281
    %947 = vmatpush1.msra.mxu0 %v280
    %948 = vmatprep.subr.mxu0 %v285
    %949 = vmatpush1.msra.mxu0 %v284
    %950 = vmatprep.subr.mxu0 %v289
    %951 = vmatpush1.msra.mxu0 %v288
    %952 = vmatprep.subr.mxu0 %v293
    %953 = vmatpush1.msra.mxu0 %v292
    %954 = vmatprep.subr.mxu0 %v297
    %955 = vmatpush1.msra.mxu0 %v296
    %956 = vmatprep.subr.mxu0 %v301
    %957 = vmatpush1.msra.mxu0 %v300
    %958 = vmatprep.subr.mxu0 %v305
    %959 = vmatpush1.msra.mxu0 %v304
    %960 = vmatprep.subr.mxu0 %v309
    %961 = vmatpush1.msra.mxu0 %v308
    %962 = vmatprep.subr.mxu0 %v313
    %963 = vmatpush1.msra.mxu0 %v312
    %964 = vmatprep.subr.mxu0 %v317
    %965 = vmatpush1.msra.mxu0 %v316
    %966 = vmatprep.subr.mxu0 %v321
    %967 = vmatpush1.msra.mxu0 %v320
    %968 = vmatprep.subr.mxu0 %v325
    %969 = vmatpush1.msra.mxu0 %v324
    %970 = vmatprep.subr.mxu0 %v329
    %971 = vmatpush1.msra.mxu0 %v328
    %972 = vmatprep.subr.mxu0 %v333
    %973 = vmatpush1.msra.mxu0 %v332
    %974 = vmatprep.subr.mxu0 %v337
    %975 = vmatpush1.msra.mxu0 %v336
    %976 = vmatprep.subr.mxu0 %v341
    %977 = vmatpush1.msra.mxu0 %v340
    %978 = vmatprep.subr.mxu0 %v345
    %979 = vmatpush1.msra.mxu0 %v344
    %980 = vmatprep.subr.mxu0 %v349
    %981 = vmatpush1.msra.mxu0 %v348
    %982 = vmatprep.subr.mxu0 %v353
    %983 = vmatpush1.msra.mxu0 %v352
    %984 = vmatprep.subr.mxu0 %v357
    %985 = vmatpush1.msra.mxu0 %v356
    %986 = vmatprep.subr.mxu0 %v361
    %987 = vmatpush1.msra.mxu0 %v360
    %988 = vmatprep.subr.mxu0 %v365
    %989 = vmatpush1.msra.mxu0 %v364
    %990 = vmatprep.subr.mxu0 %v369
    %991 = vmatpush1.msra.mxu0 %v368
    %992 = vmatprep.subr.mxu0 %v373
    %993 = vmatpush1.msra.mxu0 %v372
    %994 = vmatprep.subr.mxu0 %v377
    %995 = vmatpush1.msra.mxu0 %v376
    %996 = vmatprep.subr.mxu0 %v381
    %997 = vmatpush1.msra.mxu0 %v380
    %998 = vmatprep.subr.mxu0 %v385
    %999 = vmatpush1.msra.mxu0 %v384
    %1000 = vmatprep.mubr.f32.mxu0 %v119
    %1001 = vmatmul.mubr.f32.gmra.mrb[0].mxu0 %v118
    %v1002 = vpop.f32.mrb[0].mxu0
    %v1003 = vadd.f32 %v926, %v1002
    %v1004 = vpop.f32.mrb[0].mxu0
    %v1005 = vadd.f32 %v928, %v1004
    %1006 = vmatprep.mubr.f32.mxu0 %v126
    %1007 = vmatmul.mubr.f32.gmra.mrb[0].mxu0 %v125
    %v1008 = vpop.f32.mrb[0].mxu0
    %v1009 = vadd.f32 %v932, %v1008
    %v1010 = vpop.f32.mrb[0].mxu0
    %v1011 = vadd.f32 %v934, %v1010
    %1012 = vdwg.mxu0
    %1013 = vmatprep.subr.mxu0 %v389
    %1014 = vmatpush1.msra.mxu0 %v388
    %1015 = vmatprep.subr.mxu0 %v393
    %1016 = vmatpush1.msra.mxu0 %v392
    %1017 = vmatprep.subr.mxu0 %v397
    %1018 = vmatpush1.msra.mxu0 %v396
    %1019 = vmatprep.subr.mxu0 %v401
    %1020 = vmatpush1.msra.mxu0 %v400
    %1021 = vmatprep.subr.mxu0 %v405
    %1022 = vmatpush1.msra.mxu0 %v404
    %1023 = vmatprep.subr.mxu0 %v409
    %1024 = vmatpush1.msra.mxu0 %v408
    %1025 = vmatprep.subr.mxu0 %v413
    %1026 = vmatpush1.msra.mxu0 %v412
    %1027 = vmatprep.subr.mxu0 %v417
    %1028 = vmatpush1.msra.mxu0 %v416
    %1029 = vmatprep.subr.mxu0 %v421
    %1030 = vmatpush1.msra.mxu0 %v420
    %1031 = vmatprep.subr.mxu0 %v425
    %1032 = vmatpush1.msra.mxu0 %v424
    %1033 = vmatprep.subr.mxu0 %v429
    %1034 = vmatpush1.msra.mxu0 %v428
    %1035 = vmatprep.subr.mxu0 %v433
    %1036 = vmatpush1.msra.mxu0 %v432
    %1037 = vmatprep.subr.mxu0 %v437
    %1038 = vmatpush1.msra.mxu0 %v436
    %1039 = vmatprep.subr.mxu0 %v441
    %1040 = vmatpush1.msra.mxu0 %v440
    %1041 = vmatprep.subr.mxu0 %v445
    %1042 = vmatpush1.msra.mxu0 %v444
    %1043 = vmatprep.subr.mxu0 %v449
    %1044 = vmatpush1.msra.mxu0 %v448
    %1045 = vmatprep.subr.mxu0 %v453
    %1046 = vmatpush1.msra.mxu0 %v452
    %1047 = vmatprep.subr.mxu0 %v457
    %1048 = vmatpush1.msra.mxu0 %v456
    %1049 = vmatprep.subr.mxu0 %v461
    %1050 = vmatpush1.msra.mxu0 %v460
    %1051 = vmatprep.subr.mxu0 %v465
    %1052 = vmatpush1.msra.mxu0 %v464
    %1053 = vmatprep.subr.mxu0 %v469
    %1054 = vmatpush1.msra.mxu0 %v468
    %1055 = vmatprep.subr.mxu0 %v473
    %1056 = vmatpush1.msra.mxu0 %v472
    %1057 = vmatprep.subr.mxu0 %v477
    %1058 = vmatpush1.msra.mxu0 %v476
    %1059 = vmatprep.subr.mxu0 %v481
    %1060 = vmatpush1.msra.mxu0 %v480
    %1061 = vmatprep.subr.mxu0 %v485
    %1062 = vmatpush1.msra.mxu0 %v484
    %1063 = vmatprep.subr.mxu0 %v489
    %1064 = vmatpush1.msra.mxu0 %v488
    %1065 = vmatprep.subr.mxu0 %v493
    %1066 = vmatpush1.msra.mxu0 %v492
    %1067 = vmatprep.subr.mxu0 %v497
    %1068 = vmatpush1.msra.mxu0 %v496
    %1069 = vmatprep.subr.mxu0 %v501
    %1070 = vmatpush1.msra.mxu0 %v500
    %1071 = vmatprep.subr.mxu0 %v505
    %1072 = vmatpush1.msra.mxu0 %v504
    %1073 = vmatprep.subr.mxu0 %v509
    %1074 = vmatpush1.msra.mxu0 %v508
    %1075 = vmatprep.subr.mxu0 %v513
    %1076 = vmatpush1.msra.mxu0 %v512
    %1077 = vmatprep.mubr.f32.mxu0 %v121
    %1078 = vmatmul.mubr.f32.gmra.mrb[0].mxu0 %v120
    %v1079 = vpop.f32.mrb[0].mxu0
    %v1080 = vadd.f32 %v1003, %v1079
    %v1081 = vpop.f32.mrb[0].mxu0
    %v1082 = vadd.f32 %v1005, %v1081
    %1083 = vmatprep.mubr.f32.mxu0 %v128
    %1084 = vmatmul.mubr.f32.gmra.mrb[0].mxu0 %v127
    %v1085 = vpop.f32.mrb[0].mxu0
    %v1086 = vadd.f32 %v1009, %v1085
    %v1087 = vpop.f32.mrb[0].mxu0
    %v1088 = vadd.f32 %v1011, %v1087
    %1089 = vdwg.mxu0
    %1090 = vmatprep.subr.mxu0 %v517
    %1091 = vmatpush1.msra.mxu0 %v516
    %1092 = vmatprep.subr.mxu0 %v521
    %1093 = vmatpush1.msra.mxu0 %v520
    %1094 = vmatprep.subr.mxu0 0.0
    %1095 = vmatpush1.msra.mxu0 0.0
    %1096 = vmatprep.subr.mxu0 0.0
    %1097 = vmatpush1.msra.mxu0 0.0
    %1098 = vmatprep.subr.mxu0 0.0
    %1099 = vmatpush1.msra.mxu0 0.0
    %1100 = vmatprep.subr.mxu0 0.0
    %1101 = vmatpush1.msra.mxu0 0.0
    %1102 = vmatprep.subr.mxu0 0.0
    %1103 = vmatpush1.msra.mxu0 0.0
    %1104 = vmatprep.subr.mxu0 0.0
    %1105 = vmatpush1.msra.mxu0 0.0
    %1106 = vmatprep.subr.mxu0 0.0
    %1107 = vmatpush1.msra.mxu0 0.0
    %1108 = vmatprep.subr.mxu0 0.0
    %1109 = vmatpush1.msra.mxu0 0.0
    %1110 = vmatprep.subr.mxu0 0.0
    %1111 = vmatpush1.msra.mxu0 0.0
    %1112 = vmatprep.subr.mxu0 0.0
    %1113 = vmatpush1.msra.mxu0 0.0
    %1114 = vmatprep.subr.mxu0 0.0
    %1115 = vmatpush1.msra.mxu0 0.0
    %1116 = vmatprep.subr.mxu0 0.0
    %1117 = vmatpush1.msra.mxu0 0.0
    %1118 = vmatprep.subr.mxu0 0.0
    %1119 = vmatpush1.msra.mxu0 0.0
    %1120 = vmatprep.subr.mxu0 0.0
    %1121 = vmatpush1.msra.mxu0 0.0
    %1122 = vmatprep.subr.mxu0 0.0
    %1123 = vmatpush1.msra.mxu0 0.0
    %1124 = vmatprep.subr.mxu0 0.0
    %1125 = vmatpush1.msra.mxu0 0.0
    %1126 = vmatprep.subr.mxu0 0.0
    %1127 = vmatpush1.msra.mxu0 0.0
    %1128 = vmatprep.subr.mxu0 0.0
    %1129 = vmatpush1.msra.mxu0 0.0
    %1130 = vmatprep.subr.mxu0 0.0
    %1131 = vmatpush1.msra.mxu0 0.0
    %1132 = vmatprep.subr.mxu0 0.0
    %1133 = vmatpush1.msra.mxu0 0.0
    %1134 = vmatprep.subr.mxu0 0.0
    %1135 = vmatpush1.msra.mxu0 0.0
    %1136 = vmatprep.subr.mxu0 0.0
    %1137 = vmatpush1.msra.mxu0 0.0
    %1138 = vmatprep.subr.mxu0 0.0
    %1139 = vmatpush1.msra.mxu0 0.0
    %1140 = vmatprep.subr.mxu0 0.0
    %1141 = vmatpush1.msra.mxu0 0.0
    %1142 = vmatprep.subr.mxu0 0.0
    %1143 = vmatpush1.msra.mxu0 0.0
    %1144 = vmatprep.subr.mxu0 0.0
    %1145 = vmatpush1.msra.mxu0 0.0
    %1146 = vmatprep.subr.mxu0 0.0
    %1147 = vmatpush1.msra.mxu0 0.0
    %1148 = vmatprep.subr.mxu0 0.0
    %1149 = vmatpush1.msra.mxu0 0.0
    %1150 = vmatprep.subr.mxu0 0.0
    %1151 = vmatpush1.msra.mxu0 0.0
    %1152 = vmatprep.subr.mxu0 0.0
    %1153 = vmatpush1.msra.mxu0 0.0
    %1154 = vmatprep.mubr.f32.mxu0 0.0
    %1155 = vmatmul.mubr.f32.gmra.mrb[0].mxu0 %v546
    %v1156 = vpop.f32.mrb[0].mxu0
    %v1157 = vadd.f32 %v1080, %v1156
    %v1158 = vpop.f32.mrb[0].mxu0
    %v1159 = vadd.f32 %v1082, %v1158
    %1160 = vmatprep.mubr.f32.mxu0 0.0
    %1161 = vmatmul.mubr.f32.gmra.mrb[0].mxu0 %v549
    %v1162 = vpop.f32.mrb[0].mxu0
    %v1163 = vadd.f32 %v1086, %v1162
    %v1164 = vpop.f32.mrb[0].mxu0
    %v1165 = vadd.f32 %v1088, %v1164
    %1166 = vdwg.mxu0
    %vm1167 = vcmp.gt.f32.partialorder %v849, 0.0
    %vm1168 = vcmp.gt.f32.partialorder %v851, 0.0
    %vm1169 = vcmp.gt.f32.partialorder %v1157, 0.0
    %vm1170 = vcmp.gt.f32.partialorder %v1159, 0.0
    %vm1171 = vcmp.gt.f32.partialorder %v855, 0.0
    %vm1172 = vcmp.gt.f32.partialorder %v857, 0.0
    %vm1173 = vcmp.gt.f32.partialorder %v1163, 0.0
    %vm1174 = vcmp.gt.f32.partialorder %v1165, 0.0
    %v1175 = vmul.f32 %v849, 0.2
    %v1176 = vmul.f32 %v851, 0.2
    %v1177 = vmul.f32 %v1157, 0.2
    %v1178 = vmul.f32 %v1159, 0.2
    %v1179 = vmul.f32 %v855, 0.2
    %v1180 = vmul.f32 %v857, 0.2
    %v1181 = vmul.f32 %v1163, 0.2
    %v1182 = vmul.f32 %v1165, 0.2
    %v1183 = vsel %vm1167, %v849, %v1175
    %v1184 = vsel %vm1168, %v851, %v1176
    %v1185 = vsel %vm1169, %v1157, %v1177
    %v1186 = vsel %vm1170, %v1159, %v1178
    %v1187 = vsel %vm1171, %v855, %v1179
    %v1188 = vsel %vm1172, %v857, %v1180
    %v1189 = vsel %vm1173, %v1163, %v1181
    %v1190 = vsel %vm1174, %v1165, %v1182
    %v1191 = vld [vmem:[#allocation8] sm:$0xff]
    %v1192 = vld [vmem:[#allocation8 + $0x8] sm:$0xff]
    %v1193 = vld [vmem:[#allocation8 + $0x10] sm:$0xff]
    %v1194 = vld [vmem:[#allocation8 + $0x18] sm:$0xff]
    %v1195 = vld [vmem:[#allocation8 + $0x20] sm:$0xff]
    %v1196 = vld [vmem:[#allocation8 + $0x28] sm:$0xff]
    %v1197 = vld [vmem:[#allocation8 + $0x30] sm:$0xff]
    %v1198 = vld [vmem:[#allocation8 + $0x38] sm:$0xff]
    %v1199 = vld [vmem:[#allocation8 + $0x40] sm:$0xff]
    %v1200 = vld [vmem:[#allocation8 + $0x48] sm:$0xff]
    %v1201 = vld [vmem:[#allocation8 + $0x50] sm:$0xff]
    %v1202 = vld [vmem:[#allocation8 + $0x58] sm:$0xff]
    %v1203 = vld [vmem:[#allocation8 + $0x60] sm:$0xff]
    %v1204 = vld [vmem:[#allocation8 + $0x68] sm:$0xff]
    %v1205 = vld [vmem:[#allocation8 + $0x70] sm:$0xff]
    %v1206 = vld [vmem:[#allocation8 + $0x78] sm:$0xff]
    %v1207 = vld [vmem:[#allocation8 + $0x80] sm:$0xff]
    %v1208 = vld [vmem:[#allocation8 + $0x88] sm:$0xff]
    %v1209 = vld [vmem:[#allocation8 + $0x90] sm:$0xff]
    %v1210 = vld [vmem:[#allocation8 + $0x98] sm:$0xff]
    %v1211 = vld [vmem:[#allocation8 + $0xa0] sm:$0xff]
    %v1212 = vld [vmem:[#allocation8 + $0xa8] sm:$0xff]
    %v1213 = vld [vmem:[#allocation8 + $0xb0] sm:$0xff]
    %v1214 = vld [vmem:[#allocation8 + $0xb8] sm:$0xff]
    %v1215 = vld [vmem:[#allocation8 + $0xc0] sm:$0xff]
    %v1216 = vld [vmem:[#allocation8 + $0xc8] sm:$0xff]
    %v1217 = vld [vmem:[#allocation8 + $0xd0] sm:$0xff]
    %v1218 = vld [vmem:[#allocation8 + $0xd8] sm:$0xff]
    %v1219 = vld [vmem:[#allocation8 + $0xe0] sm:$0xff]
    %v1220 = vld [vmem:[#allocation8 + $0xe8] sm:$0xff]
    %v1221 = vld [vmem:[#allocation8 + $0xf0] sm:$0xff]
    %v1222 = vld [vmem:[#allocation8 + $0xf8] sm:$0xff]
    %v1223 = vld [vmem:[#allocation8 + $0x100] sm:$0xff]
    %v1224 = vld [vmem:[#allocation8 + $0x108] sm:$0xff]
    %v1225 = vld [vmem:[#allocation8 + $0x110] sm:$0xff]
    %v1226 = vld [vmem:[#allocation8 + $0x118] sm:$0xff]
    %v1227 = vld [vmem:[#allocation8 + $0x120] sm:$0xff]
    %v1228 = vld [vmem:[#allocation8 + $0x128] sm:$0xff]
    %v1229 = vld [vmem:[#allocation8 + $0x130] sm:$0xff]
    %v1230 = vld [vmem:[#allocation8 + $0x138] sm:$0xff]
    %v1231 = vld [vmem:[#allocation8 + $0x140] sm:$0xff]
    %v1232 = vld [vmem:[#allocation8 + $0x148] sm:$0xff]
    %v1233 = vld [vmem:[#allocation8 + $0x150] sm:$0xff]
    %v1234 = vld [vmem:[#allocation8 + $0x158] sm:$0xff]
    %v1235 = vld [vmem:[#allocation8 + $0x160] sm:$0xff]
    %v1236 = vld [vmem:[#allocation8 + $0x168] sm:$0xff]
    %v1237 = vld [vmem:[#allocation8 + $0x170] sm:$0xff]
    %v1238 = vld [vmem:[#allocation8 + $0x178] sm:$0xff]
    %v1239 = vld [vmem:[#allocation8 + $0x180] sm:$0xff]
    %v1240 = vld [vmem:[#allocation8 + $0x188] sm:$0xff]
    %v1241 = vld [vmem:[#allocation8 + $0x190] sm:$0xff]
    %v1242 = vld [vmem:[#allocation8 + $0x198] sm:$0xff]
    %v1243 = vld [vmem:[#allocation8 + $0x1a0] sm:$0xff]
    %v1244 = vld [vmem:[#allocation8 + $0x1a8] sm:$0xff]
    %v1245 = vld [vmem:[#allocation8 + $0x1b0] sm:$0xff]
    %v1246 = vld [vmem:[#allocation8 + $0x1b8] sm:$0xff]
    %v1247 = vld [vmem:[#allocation8 + $0x1c0] sm:$0xff]
    %v1248 = vld [vmem:[#allocation8 + $0x1c8] sm:$0xff]
    %v1249 = vld [vmem:[#allocation8 + $0x1d0] sm:$0xff]
    %v1250 = vld [vmem:[#allocation8 + $0x1d8] sm:$0xff]
    %v1251 = vld [vmem:[#allocation8 + $0x1e0] sm:$0xff]
    %v1252 = vld [vmem:[#allocation8 + $0x1e8] sm:$0xff]
    %v1253 = vld [vmem:[#allocation8 + $0x1f0] sm:$0xff]
    %v1254 = vld [vmem:[#allocation8 + $0x1f8] sm:$0xff]
    %v1255 = vld [vmem:[#allocation8 + $0x200] sm:$0xff]
    %v1256 = vld [vmem:[#allocation8 + $0x208] sm:$0xff]
    %v1257 = vld [vmem:[#allocation8 + $0x210] sm:$0xff]
    %v1258 = vld [vmem:[#allocation8 + $0x218] sm:$0xff]
    %v1259 = vld [vmem:[#allocation8 + $0x220] sm:$0xff]
    %v1260 = vld [vmem:[#allocation8 + $0x228] sm:$0xff]
    %v1261 = vld [vmem:[#allocation8 + $0x230] sm:$0xff]
    %v1262 = vld [vmem:[#allocation8 + $0x238] sm:$0xff]
    %v1263 = vld [vmem:[#allocation8 + $0x240] sm:$0xff]
    %v1264 = vld [vmem:[#allocation8 + $0x248] sm:$0xff]
    %v1265 = vld [vmem:[#allocation8 + $0x250] sm:$0xff]
    %v1266 = vld [vmem:[#allocation8 + $0x258] sm:$0xff]
    %v1267 = vld [vmem:[#allocation8 + $0x260] sm:$0xff]
    %v1268 = vld [vmem:[#allocation8 + $0x268] sm:$0xff]
    %v1269 = vld [vmem:[#allocation8 + $0x270] sm:$0xff]
    %v1270 = vld [vmem:[#allocation8 + $0x278] sm:$0xff]
    %v1271 = vld [vmem:[#allocation8 + $0x280] sm:$0xff]
    %v1272 = vld [vmem:[#allocation8 + $0x288] sm:$0xff]
    %v1273 = vld [vmem:[#allocation8 + $0x290] sm:$0xff]
    %v1274 = vld [vmem:[#allocation8 + $0x298] sm:$0xff]
    %v1275 = vld [vmem:[#allocation8 + $0x2a0] sm:$0xff]
    %v1276 = vld [vmem:[#allocation8 + $0x2a8] sm:$0xff]
    %v1277 = vld [vmem:[#allocation8 + $0x2b0] sm:$0xff]
    %v1278 = vld [vmem:[#allocation8 + $0x2b8] sm:$0xff]
    %v1279 = vld [vmem:[#allocation8 + $0x2c0] sm:$0xff]
    %v1280 = vld [vmem:[#allocation8 + $0x2c8] sm:$0xff]
    %v1281 = vld [vmem:[#allocation8 + $0x2d0] sm:$0xff]
    %v1282 = vld [vmem:[#allocation8 + $0x2d8] sm:$0xff]
    %v1283 = vld [vmem:[#allocation8 + $0x2e0] sm:$0xff]
    %v1284 = vld [vmem:[#allocation8 + $0x2e8] sm:$0xff]
    %v1285 = vld [vmem:[#allocation8 + $0x2f0] sm:$0xff]
    %v1286 = vld [vmem:[#allocation8 + $0x2f8] sm:$0xff]
    %v1287 = vld [vmem:[#allocation8 + $0x300] sm:$0xff]
    %v1288 = vld [vmem:[#allocation8 + $0x308] sm:$0xff]
    %v1289 = vld [vmem:[#allocation8 + $0x310] sm:$0xff]
    %v1290 = vld [vmem:[#allocation8 + $0x318] sm:$0xff]
    %v1291 = vld [vmem:[#allocation8 + $0x320] sm:$0xff]
    %v1292 = vld [vmem:[#allocation8 + $0x328] sm:$0xff]
    %v1293 = vld [vmem:[#allocation8 + $0x330] sm:$0xff]
    %v1294 = vld [vmem:[#allocation8 + $0x338] sm:$0xff]
    %v1295 = vld [vmem:[#allocation8 + $0x340] sm:$0xff]
    %v1296 = vld [vmem:[#allocation8 + $0x348] sm:$0xff]
    %v1297 = vld [vmem:[#allocation8 + $0x350] sm:$0xff]
    %v1298 = vld [vmem:[#allocation8 + $0x358] sm:$0xff]
    %v1299 = vld [vmem:[#allocation8 + $0x360] sm:$0xff]
    %v1300 = vld [vmem:[#allocation8 + $0x368] sm:$0xff]
    %v1301 = vld [vmem:[#allocation8 + $0x370] sm:$0xff]
    %v1302 = vld [vmem:[#allocation8 + $0x378] sm:$0xff]
    %v1303 = vld [vmem:[#allocation8 + $0x380] sm:$0xff]
    %v1304 = vld [vmem:[#allocation8 + $0x388] sm:$0xff]
    %v1305 = vld [vmem:[#allocation8 + $0x390] sm:$0xff]
    %v1306 = vld [vmem:[#allocation8 + $0x398] sm:$0xff]
    %v1307 = vld [vmem:[#allocation8 + $0x3a0] sm:$0xff]
    %v1308 = vld [vmem:[#allocation8 + $0x3a8] sm:$0xff]
    %v1309 = vld [vmem:[#allocation8 + $0x3b0] sm:$0xff]
    %v1310 = vld [vmem:[#allocation8 + $0x3b8] sm:$0xff]
    %v1311 = vld [vmem:[#allocation8 + $0x3c0] sm:$0xff]
    %v1312 = vld [vmem:[#allocation8 + $0x3c8] sm:$0xff]
    %v1313 = vld [vmem:[#allocation8 + $0x3d0] sm:$0xff]
    %v1314 = vld [vmem:[#allocation8 + $0x3d8] sm:$0xff]
    %v1315 = vld [vmem:[#allocation8 + $0x3e0] sm:$0xff]
    %v1316 = vld [vmem:[#allocation8 + $0x3e8] sm:$0xff]
    %v1317 = vld [vmem:[#allocation8 + $0x3f0] sm:$0xff]
    %v1318 = vld [vmem:[#allocation8 + $0x3f8] sm:$0xff]
    %v1319 = vld [vmem:[#allocation10] sm:$0x3]
    %v1321 = vlaneseq
    %v1322 = vshrl.u32 %v1321, 7
    %v1323 = vsub.s32 0, %v1322
    %v1324 = vrot.slane %v1319, %v1323
    %v1325 = vlaneseq
    %v1326 = vshrl.u32 %v1325, 7
    %v1327 = vsub.s32 1, %v1326
    %v1328 = vrot.slane %v1319, %v1327
    %1331 = vmatprep.subr.mxu0 %v1192
    %1332 = vmatpush1.msra.mxu0 %v1191
    %1333 = vmatprep.subr.mxu0 %v1194
    %1334 = vmatpush1.msra.mxu0 %v1193
    %1335 = vmatprep.subr.mxu0 %v1196
    %1336 = vmatpush1.msra.mxu0 %v1195
    %1337 = vmatprep.subr.mxu0 %v1198
    %1338 = vmatpush1.msra.mxu0 %v1197
    %1339 = vmatprep.subr.mxu0 %v1200
    %1340 = vmatpush1.msra.mxu0 %v1199
    %1341 = vmatprep.subr.mxu0 %v1202
    %1342 = vmatpush1.msra.mxu0 %v1201
    %1343 = vmatprep.subr.mxu0 %v1204
    %1344 = vmatpush1.msra.mxu0 %v1203
    %1345 = vmatprep.subr.mxu0 %v1206
    %1346 = vmatpush1.msra.mxu0 %v1205
    %1347 = vmatprep.subr.mxu0 %v1208
    %1348 = vmatpush1.msra.mxu0 %v1207
    %1349 = vmatprep.subr.mxu0 %v1210
    %1350 = vmatpush1.msra.mxu0 %v1209
    %1351 = vmatprep.subr.mxu0 %v1212
    %1352 = vmatpush1.msra.mxu0 %v1211
    %1353 = vmatprep.subr.mxu0 %v1214
    %1354 = vmatpush1.msra.mxu0 %v1213
    %1355 = vmatprep.subr.mxu0 %v1216
    %1356 = vmatpush1.msra.mxu0 %v1215
    %1357 = vmatprep.subr.mxu0 %v1218
    %1358 = vmatpush1.msra.mxu0 %v1217
    %1359 = vmatprep.subr.mxu0 %v1220
    %1360 = vmatpush1.msra.mxu0 %v1219
    %1361 = vmatprep.subr.mxu0 %v1222
    %1362 = vmatpush1.msra.mxu0 %v1221
    %1363 = vmatprep.subr.mxu0 %v1224
    %1364 = vmatpush1.msra.mxu0 %v1223
    %1365 = vmatprep.subr.mxu0 %v1226
    %1366 = vmatpush1.msra.mxu0 %v1225
    %1367 = vmatprep.subr.mxu0 %v1228
    %1368 = vmatpush1.msra.mxu0 %v1227
    %1369 = vmatprep.subr.mxu0 %v1230
    %1370 = vmatpush1.msra.mxu0 %v1229
    %1371 = vmatprep.subr.mxu0 %v1232
    %1372 = vmatpush1.msra.mxu0 %v1231
    %1373 = vmatprep.subr.mxu0 %v1234
    %1374 = vmatpush1.msra.mxu0 %v1233
    %1375 = vmatprep.subr.mxu0 %v1236
    %1376 = vmatpush1.msra.mxu0 %v1235
    %1377 = vmatprep.subr.mxu0 %v1238
    %1378 = vmatpush1.msra.mxu0 %v1237
    %1379 = vmatprep.subr.mxu0 %v1240
    %1380 = vmatpush1.msra.mxu0 %v1239
    %1381 = vmatprep.subr.mxu0 %v1242
    %1382 = vmatpush1.msra.mxu0 %v1241
    %1383 = vmatprep.subr.mxu0 %v1244
    %1384 = vmatpush1.msra.mxu0 %v1243
    %1385 = vmatprep.subr.mxu0 %v1246
    %1386 = vmatpush1.msra.mxu0 %v1245
    %1387 = vmatprep.subr.mxu0 %v1248
    %1388 = vmatpush1.msra.mxu0 %v1247
    %1389 = vmatprep.subr.mxu0 %v1250
    %1390 = vmatpush1.msra.mxu0 %v1249
    %1391 = vmatprep.subr.mxu0 %v1252
    %1392 = vmatpush1.msra.mxu0 %v1251
    %1393 = vmatprep.subr.mxu0 %v1254
    %1394 = vmatpush1.msra.mxu0 %v1253
    %1395 = vmatprep.mubr.f32.mxu0 %v1184
    %1396 = vmatmul.mubr.f32.gmra.mrb[0].mxu0 %v1183
    %v1397 = vpop.f32.mrb[0].mxu0
    %v1398 = vadd.f32 %v1324, %v1397
    %v1399 = vpop.f32.mrb[0].mxu0
    %v1400 = vadd.f32 %v1328, %v1399
    %1401 = vmatprep.mubr.f32.mxu0 %v1188
    %1402 = vmatmul.mubr.f32.gmra.mrb[0].mxu0 %v1187
    %v1403 = vpop.f32.mrb[0].mxu0
    %v1404 = vadd.f32 %v1324, %v1403
    %v1405 = vpop.f32.mrb[0].mxu0
    %v1406 = vadd.f32 %v1328, %v1405
    %1407 = vdwg.mxu0
    %1408 = vmatprep.subr.mxu0 %v1256
    %1409 = vmatpush1.msra.mxu0 %v1255
    %1410 = vmatprep.subr.mxu0 %v1258
    %1411 = vmatpush1.msra.mxu0 %v1257
    %1412 = vmatprep.subr.mxu0 %v1260
    %1413 = vmatpush1.msra.mxu0 %v1259
    %1414 = vmatprep.subr.mxu0 %v1262
    %1415 = vmatpush1.msra.mxu0 %v1261
    %1416 = vmatprep.subr.mxu0 %v1264
    %1417 = vmatpush1.msra.mxu0 %v1263
    %1418 = vmatprep.subr.mxu0 %v1266
    %1419 = vmatpush1.msra.mxu0 %v1265
    %1420 = vmatprep.subr.mxu0 %v1268
    %1421 = vmatpush1.msra.mxu0 %v1267
    %1422 = vmatprep.subr.mxu0 %v1270
    %1423 = vmatpush1.msra.mxu0 %v1269
    %1424 = vmatprep.subr.mxu0 %v1272
    %1425 = vmatpush1.msra.mxu0 %v1271
    %1426 = vmatprep.subr.mxu0 %v1274
    %1427 = vmatpush1.msra.mxu0 %v1273
    %1428 = vmatprep.subr.mxu0 %v1276
    %1429 = vmatpush1.msra.mxu0 %v1275
    %1430 = vmatprep.subr.mxu0 %v1278
    %1431 = vmatpush1.msra.mxu0 %v1277
    %1432 = vmatprep.subr.mxu0 %v1280
    %1433 = vmatpush1.msra.mxu0 %v1279
    %1434 = vmatprep.subr.mxu0 %v1282
    %1435 = vmatpush1.msra.mxu0 %v1281
    %1436 = vmatprep.subr.mxu0 %v1284
    %1437 = vmatpush1.msra.mxu0 %v1283
    %1438 = vmatprep.subr.mxu0 %v1286
    %1439 = vmatpush1.msra.mxu0 %v1285
    %1440 = vmatprep.subr.mxu0 %v1288
    %1441 = vmatpush1.msra.mxu0 %v1287
    %1442 = vmatprep.subr.mxu0 %v1290
    %1443 = vmatpush1.msra.mxu0 %v1289
    %1444 = vmatprep.subr.mxu0 %v1292
    %1445 = vmatpush1.msra.mxu0 %v1291
    %1446 = vmatprep.subr.mxu0 %v1294
    %1447 = vmatpush1.msra.mxu0 %v1293
    %1448 = vmatprep.subr.mxu0 %v1296
    %1449 = vmatpush1.msra.mxu0 %v1295
    %1450 = vmatprep.subr.mxu0 %v1298
    %1451 = vmatpush1.msra.mxu0 %v1297
    %1452 = vmatprep.subr.mxu0 %v1300
    %1453 = vmatpush1.msra.mxu0 %v1299
    %1454 = vmatprep.subr.mxu0 %v1302
    %1455 = vmatpush1.msra.mxu0 %v1301
    %1456 = vmatprep.subr.mxu0 %v1304
    %1457 = vmatpush1.msra.mxu0 %v1303
    %1458 = vmatprep.subr.mxu0 %v1306
    %1459 = vmatpush1.msra.mxu0 %v1305
    %1460 = vmatprep.subr.mxu0 %v1308
    %1461 = vmatpush1.msra.mxu0 %v1307
    %1462 = vmatprep.subr.mxu0 %v1310
    %1463 = vmatpush1.msra.mxu0 %v1309
    %1464 = vmatprep.subr.mxu0 %v1312
    %1465 = vmatpush1.msra.mxu0 %v1311
    %1466 = vmatprep.subr.mxu0 %v1314
    %1467 = vmatpush1.msra.mxu0 %v1313
    %1468 = vmatprep.subr.mxu0 %v1316
    %1469 = vmatpush1.msra.mxu0 %v1315
    %1470 = vmatprep.subr.mxu0 %v1318
    %1471 = vmatpush1.msra.mxu0 %v1317
    %1472 = vmatprep.mubr.f32.mxu0 %v1186
    %1473 = vmatmul.mubr.f32.gmra.mrb[0].mxu0 %v1185
    %v1474 = vpop.f32.mrb[0].mxu0
    %v1475 = vadd.f32 %v1398, %v1474
    %v1476 = vpop.f32.mrb[0].mxu0
    %v1477 = vadd.f32 %v1400, %v1476
    %1478 = vmatprep.mubr.f32.mxu0 %v1190
    %1479 = vmatmul.mubr.f32.gmra.mrb[0].mxu0 %v1189
    %v1480 = vpop.f32.mrb[0].mxu0
    %v1481 = vadd.f32 %v1404, %v1480
    %v1482 = vpop.f32.mrb[0].mxu0
    %v1483 = vadd.f32 %v1406, %v1482
    %1484 = vdwg.mxu0
    %vm1485 = vcmp.gt.f32.partialorder %v1475, 0.0
    %vm1486 = vcmp.gt.f32.partialorder %v1477, 0.0
    %vm1487 = vcmp.gt.f32.partialorder %v1481, 0.0
    %vm1488 = vcmp.gt.f32.partialorder %v1483, 0.0
    %v1489 = vmul.f32 %v1475, 0.2
    %v1490 = vmul.f32 %v1477, 0.2
    %v1491 = vmul.f32 %v1481, 0.2
    %v1492 = vmul.f32 %v1483, 0.2
    %v1493 = vsel %vm1485, %v1475, %v1489
    %v1494 = vsel %vm1486, %v1477, %v1490
    %v1495 = vsel %vm1487, %v1481, %v1491
    %v1496 = vsel %vm1488, %v1483, %v1492
    %v1497 = vld [vmem:[#allocation11] sm:$0xff]
    %v1498 = vld [vmem:[#allocation11 + $0x8] sm:$0xff]
    %v1499 = vld [vmem:[#allocation11 + $0x10] sm:$0xff]
    %v1500 = vld [vmem:[#allocation11 + $0x18] sm:$0xff]
    %v1501 = vld [vmem:[#allocation11 + $0x20] sm:$0xff]
    %v1502 = vld [vmem:[#allocation11 + $0x28] sm:$0xff]
    %v1503 = vld [vmem:[#allocation11 + $0x30] sm:$0xff]
    %v1504 = vld [vmem:[#allocation11 + $0x38] sm:$0xff]
    %v1505 = vld [vmem:[#allocation11 + $0x40] sm:$0xff]
    %v1506 = vld [vmem:[#allocation11 + $0x48] sm:$0xff]
    %v1507 = vld [vmem:[#allocation11 + $0x50] sm:$0xff]
    %v1508 = vld [vmem:[#allocation11 + $0x58] sm:$0xff]
    %v1509 = vld [vmem:[#allocation11 + $0x60] sm:$0xff]
    %v1510 = vld [vmem:[#allocation11 + $0x68] sm:$0xff]
    %v1511 = vld [vmem:[#allocation11 + $0x70] sm:$0xff]
    %v1512 = vld [vmem:[#allocation11 + $0x78] sm:$0xff]
    %v1513 = vld [vmem:[#allocation11 + $0x80] sm:$0xff]
    %v1514 = vld [vmem:[#allocation11 + $0x88] sm:$0xff]
    %v1515 = vld [vmem:[#allocation11 + $0x90] sm:$0xff]
    %v1516 = vld [vmem:[#allocation11 + $0x98] sm:$0xff]
    %v1517 = vld [vmem:[#allocation11 + $0xa0] sm:$0xff]
    %v1518 = vld [vmem:[#allocation11 + $0xa8] sm:$0xff]
    %v1519 = vld [vmem:[#allocation11 + $0xb0] sm:$0xff]
    %v1520 = vld [vmem:[#allocation11 + $0xb8] sm:$0xff]
    %v1521 = vld [vmem:[#allocation11 + $0xc0] sm:$0xff]
    %v1522 = vld [vmem:[#allocation11 + $0xc8] sm:$0xff]
    %v1523 = vld [vmem:[#allocation11 + $0xd0] sm:$0xff]
    %v1524 = vld [vmem:[#allocation11 + $0xd8] sm:$0xff]
    %v1525 = vld [vmem:[#allocation11 + $0xe0] sm:$0xff]
    %v1526 = vld [vmem:[#allocation11 + $0xe8] sm:$0xff]
    %v1527 = vld [vmem:[#allocation11 + $0xf0] sm:$0xff]
    %v1528 = vld [vmem:[#allocation11 + $0xf8] sm:$0xff]
    %v1529 = vld [vmem:[#allocation13] sm:$0x1]
    %v1531 = vlaneseq
    %v1532 = vshrl.u32 %v1531, 7
    %v1533 = vsub.s32 0, %v1532
    %v1534 = vrot.slane %v1529, %v1533
    %1536 = vmatprep.subr.mxu0 0.0
    %1537 = vmatpush1.msra.mxu0 %v1497
    %1538 = vmatprep.subr.mxu0 0.0
    %1539 = vmatpush1.msra.mxu0 %v1498
    %1540 = vmatprep.subr.mxu0 0.0
    %1541 = vmatpush1.msra.mxu0 %v1499
    %1542 = vmatprep.subr.mxu0 0.0
    %1543 = vmatpush1.msra.mxu0 %v1500
    %1544 = vmatprep.subr.mxu0 0.0
    %1545 = vmatpush1.msra.mxu0 %v1501
    %1546 = vmatprep.subr.mxu0 0.0
    %1547 = vmatpush1.msra.mxu0 %v1502
    %1548 = vmatprep.subr.mxu0 0.0
    %1549 = vmatpush1.msra.mxu0 %v1503
    %1550 = vmatprep.subr.mxu0 0.0
    %1551 = vmatpush1.msra.mxu0 %v1504
    %1552 = vmatprep.subr.mxu0 0.0
    %1553 = vmatpush1.msra.mxu0 %v1505
    %1554 = vmatprep.subr.mxu0 0.0
    %1555 = vmatpush1.msra.mxu0 %v1506
    %1556 = vmatprep.subr.mxu0 0.0
    %1557 = vmatpush1.msra.mxu0 %v1507
    %1558 = vmatprep.subr.mxu0 0.0
    %1559 = vmatpush1.msra.mxu0 %v1508
    %1560 = vmatprep.subr.mxu0 0.0
    %1561 = vmatpush1.msra.mxu0 %v1509
    %1562 = vmatprep.subr.mxu0 0.0
    %1563 = vmatpush1.msra.mxu0 %v1510
    %1564 = vmatprep.subr.mxu0 0.0
    %1565 = vmatpush1.msra.mxu0 %v1511
    %1566 = vmatprep.subr.mxu0 0.0
    %1567 = vmatpush1.msra.mxu0 %v1512
    %1568 = vmatprep.subr.mxu0 0.0
    %1569 = vmatpush1.msra.mxu0 %v1513
    %1570 = vmatprep.subr.mxu0 0.0
    %1571 = vmatpush1.msra.mxu0 %v1514
    %1572 = vmatprep.subr.mxu0 0.0
    %1573 = vmatpush1.msra.mxu0 %v1515
    %1574 = vmatprep.subr.mxu0 0.0
    %1575 = vmatpush1.msra.mxu0 %v1516
    %1576 = vmatprep.subr.mxu0 0.0
    %1577 = vmatpush1.msra.mxu0 %v1517
    %1578 = vmatprep.subr.mxu0 0.0
    %1579 = vmatpush1.msra.mxu0 %v1518
    %1580 = vmatprep.subr.mxu0 0.0
    %1581 = vmatpush1.msra.mxu0 %v1519
    %1582 = vmatprep.subr.mxu0 0.0
    %1583 = vmatpush1.msra.mxu0 %v1520
    %1584 = vmatprep.subr.mxu0 0.0
    %1585 = vmatpush1.msra.mxu0 %v1521
    %1586 = vmatprep.subr.mxu0 0.0
    %1587 = vmatpush1.msra.mxu0 %v1522
    %1588 = vmatprep.subr.mxu0 0.0
    %1589 = vmatpush1.msra.mxu0 %v1523
    %1590 = vmatprep.subr.mxu0 0.0
    %1591 = vmatpush1.msra.mxu0 %v1524
    %1592 = vmatprep.subr.mxu0 0.0
    %1593 = vmatpush1.msra.mxu0 %v1525
    %1594 = vmatprep.subr.mxu0 0.0
    %1595 = vmatpush1.msra.mxu0 %v1526
    %1596 = vmatprep.subr.mxu0 0.0
    %1597 = vmatpush1.msra.mxu0 %v1527
    %1598 = vmatprep.subr.mxu0 0.0
    %1599 = vmatpush1.msra.mxu0 %v1528
    %1600 = vmatprep.mubr.f32.mxu0 %v1494
    %1601 = vmatmul.mubr.f32.gmra.mrb[0].mxu0 %v1493
    %v1602 = vpop.f32.mrb[0].mxu0
    %v1603 = vadd.f32 %v1534, %v1602
    %v1604 = vpop.f32.mrb[0].mxu0
    %1605 = vmatprep.mubr.f32.mxu0 %v1496
    %1606 = vmatmul.mubr.f32.gmra.mrb[0].mxu0 %v1495
    %v1607 = vpop.f32.mrb[0].mxu0
    %v1608 = vadd.f32 %v1534, %v1607
    %v1609 = vpop.f32.mrb[0].mxu0
    %1610 = vdwg.mxu0
    %v1611 = vxor.u32 %v1603, 2147483648
    %v1612 = vxor.u32 %v1608, 2147483648
    %v1613 = vmul.f32 %v1611, 1.442695
    %v1614 = vpow.pop %v1613
    %v1615 = vmul.f32 %v1612, 1.442695
    %v1616 = vpow.pop %v1615
    %v1617 = vadd.f32 %v1614, 1.0
    %v1618 = vadd.f32 %v1616, 1.0
    %v1619 = vrcp.pop %v1617
    %v1620 = vmul.f32 1.0, %v1619
    %v1621 = vrcp.pop %v1618
    %v1622 = vmul.f32 1.0, %v1621
    %1623 = vst [vmem:[#allocation14] sm:$0xff] %v1620
    %1624 = vst [vmem:[#allocation14 + $0x8] sm:$0xff] %v1622
    // Predicated region
    $region58: #{tpu_custom_call.1} parent=1 // pred_check
      _
    $region59: #{tpu_custom_call.1} parent=1 // pred_check_branch
      %1626 = sbr.rel (0) target = $region61
    $region60: #{tpu_custom_call.1} parent=1 // pred_region
      %s1628 = ssub.s32 256, 256
      %1629 = vsyncadd [#allocation4], %s1628
      %s1630 = sshll.u32 [#allocation14], 4
      %s1631 = int_to_ptr.vmem [resolvable:$true] %s1630
      %1636 = dma.vmem_to_hbm [thread:$0]  %s1631, 256, %s7, [#allocation4], 128, 128, 8
    $region61: #{tpu_custom_call.1} parent=1 // pred_fallthru
      _
    // Predicated region
    $region62: #{tpu_custom_call.1} parent=1 // pred_check
      _
    $region63: #{tpu_custom_call.1} parent=1 // pred_check_branch
      %1638 = sbr.rel (0) target = $region65
    $region64: #{tpu_custom_call.1} parent=1 // pred_region
      %1639 = dma.done [#allocation4], 256
    $region65: #{tpu_custom_call.1} parent=1 // pred_fallthru
      _
    %1640 = vsyncpa [#allocation3], 1
    %1641 = vsyncpa [#allocation6], 1
    %1642 = vsyncpa [#allocation9], 1
    %1643 = vsyncpa [#allocation12], 1
    %1644 = vsyncpa [#allocation4], 1

</llo_original>
